<compile_context>
chip_gen: v7x
topology: tpu7x:2x2x1
jax: 0.10.0
libtpu: 0.0.40
codegen_flags: <defaults>
</compile_context>

<pallas_src>
import functools

import jax
import jax.numpy as jnp
from jax.experimental import pallas as pl
from jax.experimental.pallas import tpu as pltpu


def _conv3x3_taps(x_f32, w_ref, mask, W):
    """3x3 / stride-1 / pad-1 conv on a flat (Cin, L) slab via 9 tap matmuls.

    x_f32: (Cin, L) f32, L = B*H*W (channels on sublanes, batch*spatial on lanes).
    w_ref: (9, Cout, Cin) bf16 VMEM ref, tap index k = kh*3 + kw (BN folded in).
    mask:  (9, L)  f32 0/1 validity masks (kill row/col wrap of the flat shift).
    W:     static image width — flat lane shift of tap (kh, kw) is (kh-1)*W+(kw-1).
    Returns (Cout, L) f32 accumulated on the MXU.
    """
    _, L = x_f32.shape
    acc = None
    for k in range(9):
        dh, dw = k // 3 - 1, k % 3 - 1
        delta = dh * W + dw                                   # static flat shift
        tap = x_f32 if delta == 0 else pltpu.roll(x_f32, (-delta) % L, axis=1)
        if k != 4:                                            # boundary taps only
            tap = tap * mask[k:k + 1, :]
        contrib = jnp.dot(w_ref[k], tap.astype(jnp.bfloat16),
                          preferred_element_type=jnp.float32)
        acc = contrib if acc is None else acc + contrib
    return acc


def basic_block_kernel(x_ref, w1_ref, w2_ref, b1_ref, b2_ref, mask_ref, o_ref,
                       *, W):
    x = x_ref[...]                                            # (C, L) f32
    mask = mask_ref[...]                                      # (9, L) f32

    # conv1 (BN1 scale folded into w1) -> bias -> ReLU
    h = _conv3x3_taps(x, w1_ref, mask, W) + b1_ref[...]
    h = jnp.maximum(h, 0.0)

    # conv2 (BN2 scale folded into w2) -> bias
    h = _conv3x3_taps(h, w2_ref, mask, W) + b2_ref[...]

    # residual add (identity = conv1 input slab) -> ReLU
    o_ref[...] = jnp.maximum(h + x, 0.0).astype(o_ref.dtype)


def _pick_batch_block(n, hw, target_lanes=2048):
    """Images per grid step: divisor of n, 128-aligned lanes, >=2 grid steps."""
    cap = max(1, target_lanes // max(hw, 1))
    candidates = [b for b in range(1, n + 1)
                  if n % b == 0 and (b == n or (b * hw) % 128 == 0)]

    def score(b):
        # prefer: fits lane target, keeps >=2 parallel steps (v7x 2 TCs), wide
        return (b <= cap, (n // b >= 2) or n < 2, b)

    return max(candidates, key=score)


def basic_block_forward(x_nchw, params, eps=1e-5):
    """BasicBlock(inplanes=C, planes=C, stride=1, downsample=None), eval BN."""
    x = x_nchw.astype(jnp.float32)
    N, C, H, W = x.shape
    HW = H * W
    w1, w2 = params["w1"], params["w2"]
    Cout = w1.shape[0]
    assert w1.shape == (C, C, 3, 3) and w2.shape == (C, C, 3, 3) and Cout == C, (
        "only the stride=1 / no-downsample / inplanes==planes case is implemented")

    # Fold eval-mode BN into per-channel scale/bias; fold the scale into the
    # conv weights (conv is linear) so the kernel only performs a bias add.
    s1 = params["g1"] / jnp.sqrt(params["v1"] + eps)
    b1 = params["b1"] - params["m1"] * s1
    s2 = params["g2"] / jnp.sqrt(params["v2"] + eps)
    b2 = params["b2"] - params["m2"] * s2

    # OIHW -> (9, Cout, Cin) bf16, tap index k = kh*3 + kw, BN scale folded in.
    def pack_w(w, s):
        w = w * s[:, None, None, None]
        return (jnp.transpose(w, (2, 3, 0, 1))
                .reshape(9, Cout, C).astype(jnp.bfloat16))

    w1m, w2m = pack_w(w1, s1), pack_w(w2, s2)
    b1m = b1.reshape(Cout, 1).astype(jnp.float32)
    b2m = b2.reshape(Cout, 1).astype(jnp.float32)

    # Batch block: B images per grid step -> (C, B*HW) lane-dense matmul RHS.
    B = _pick_batch_block(N, HW)
    L = B * HW
    grid = (N // B,)

    # Per-tap 0/1 validity masks for the rolled flat-lane shifts, tiled over the
    # B images of a block (roll wrap across image boundaries is also masked).
    pos = jnp.arange(L, dtype=jnp.int32) % HW
    hh, ww = pos // W, pos % W
    ones = jnp.ones((L,), dtype=bool)
    row = [hh != 0, ones, hh != H - 1]                        # kh = 0, 1, 2
    col = [ww != 0, ones, ww != W - 1]                        # kw = 0, 1, 2
    mask9 = jnp.stack([row[kh] & col[kw] for kh in range(3) for kw in range(3)],
                      axis=0).astype(jnp.float32)             # (9, L)

    # Lane-dense layout: channels on sublanes, batch*spatial on lanes.
    x_lanes = jnp.transpose(x, (1, 0, 2, 3)).reshape(C, N * HW)

    kernel = functools.partial(basic_block_kernel, W=W)
    out = pl.pallas_call(
        kernel,
        out_shape=jax.ShapeDtypeStruct((C, N * HW), jnp.float32),
        grid=grid,
        in_specs=[
            pl.BlockSpec((C, L), lambda n: (0, n)),           # x slab (B images)
            pl.BlockSpec((9, Cout, C), lambda n: (0, 0, 0)),  # w1 (bf16, BN folded)
            pl.BlockSpec((9, Cout, C), lambda n: (0, 0, 0)),  # w2 (bf16, BN folded)
            pl.BlockSpec((Cout, 1), lambda n: (0, 0)),        # b1
            pl.BlockSpec((Cout, 1), lambda n: (0, 0)),        # b2
            pl.BlockSpec((9, L), lambda n: (0, 0)),           # tap masks
        ],
        out_specs=pl.BlockSpec((C, L), lambda n: (0, n)),
        compiler_params=pltpu.CompilerParams(
            dimension_semantics=("parallel",)),
    )(x_lanes, w1m, w2m, b1m, b2m, mask9)

    return jnp.transpose(out.reshape(C, N, H, W), (1, 0, 2, 3))


def _reference(x_nchw, params, eps=1e-5):
    """Pure-JAX (XLA conv) reference for verification."""
    dn = jax.lax.conv_dimension_numbers(x_nchw.shape, params["w1"].shape,
                                        ("NCHW", "OIHW", "NCHW"))

    def bn(y, g, b, m, v):
        g = g.reshape(1, -1, 1, 1); b = b.reshape(1, -1, 1, 1)
        m = m.reshape(1, -1, 1, 1); v = v.reshape(1, -1, 1, 1)
        return (y - m) / jnp.sqrt(v + eps) * g + b

    out = jax.lax.conv_general_dilated(x_nchw, params["w1"], (1, 1),
                                       ((1, 1), (1, 1)), dimension_numbers=dn)
    out = jnp.maximum(bn(out, params["g1"], params["b1"],
                         params["m1"], params["v1"]), 0.0)
    out = jax.lax.conv_general_dilated(out, params["w2"], (1, 1),
                                       ((1, 1), (1, 1)), dimension_numbers=dn)
    out = bn(out, params["g2"], params["b2"], params["m2"], params["v2"])
    return jnp.maximum(out + x_nchw, 0.0)


if __name__ == "__main__":
    key = jax.random.PRNGKey(0)
    N, C, H, W = 2, 4, 16, 16       # inplanes = planes = 4, stride = 1
    ks = jax.random.split(key, 12)

    x = jax.random.normal(ks[0], (N, C, H, W), jnp.float32)

    params = {
        # conv weights in PyTorch OIHW layout, kernel_size=3, bias=False
        "w1": jax.random.normal(ks[1], (C, C, 3, 3), jnp.float32) * 0.1,
        "w2": jax.random.normal(ks[2], (C, C, 3, 3), jnp.float32) * 0.1,
        # bn1
        "g1": 1.0 + 0.1 * jax.random.normal(ks[3], (C,), jnp.float32),
        "b1": 0.1 * jax.random.normal(ks[4], (C,), jnp.float32),
        "m1": 0.1 * jax.random.normal(ks[5], (C,), jnp.float32),
        "v1": jax.random.uniform(ks[6], (C,), jnp.float32, 0.5, 1.5),
        # bn2
        "g2": 1.0 + 0.1 * jax.random.normal(ks[7], (C,), jnp.float32),
        "b2": 0.1 * jax.random.normal(ks[8], (C,), jnp.float32),
        "m2": 0.1 * jax.random.normal(ks[9], (C,), jnp.float32),
        "v2": jax.random.uniform(ks[10], (C,), jnp.float32, 0.5, 1.5),
    }

    out = jax.block_until_ready(basic_block_forward(x, params))
    ref = jax.block_until_ready(_reference(x, params))

    assert out.shape == (N, C, H, W)
    # bf16 MXU inputs -> loosened tolerance vs the f32 XLA-conv reference.
    max_err = float(jnp.max(jnp.abs(out - ref)))
    assert jnp.allclose(out, ref, rtol=5e-2, atol=5e-2), max_err
    print("KERNEL_OK")
</pallas_src>

<mosaic_0001>
module attributes {stable_mosaic.version = 11 : i64} {
  func.func @basic_block_kernel(%arg0: i32, %arg1: memref<4x256xf32, #tpu.memory_space<vmem>>, %arg2: memref<9x4x4xbf16, #tpu.memory_space<vmem>>, %arg3: memref<9x4x4xbf16, #tpu.memory_space<vmem>>, %arg4: memref<4x1xf32, #tpu.memory_space<vmem>>, %arg5: memref<4x1xf32, #tpu.memory_space<vmem>>, %arg6: memref<9x256xf32, #tpu.memory_space<vmem>>, %arg7: memref<4x256xf32, #tpu.memory_space<vmem>>) attributes {dimension_semantics = [#tpu.dimension_semantics<parallel>], iteration_bounds = array<i64: 2>, scalar_prefetch = 0 : i64, scratch_operands = 0 : i64, tpu.core_type = #tpu.core_type<tc>, window_params = [{transform_indices = @transform_0, window_bounds = array<i64: 4, 256>}, {pipeline_mode = #tpu.pipeline_mode<synchronous>, transform_indices = @transform_1, window_bounds = array<i64: 9, 4, 4>}, {pipeline_mode = #tpu.pipeline_mode<synchronous>, transform_indices = @transform_2, window_bounds = array<i64: 9, 4, 4>}, {pipeline_mode = #tpu.pipeline_mode<synchronous>, transform_indices = @transform_3, window_bounds = array<i64: 4, 1>}, {pipeline_mode = #tpu.pipeline_mode<synchronous>, transform_indices = @transform_4, window_bounds = array<i64: 4, 1>}, {pipeline_mode = #tpu.pipeline_mode<synchronous>, transform_indices = @transform_5, window_bounds = array<i64: 9, 256>}, {transform_indices = @transform_6, window_bounds = array<i64: 4, 256>}]} {
    %c0 = arith.constant 0 : index
    %c0_0 = arith.constant 0 : index
    %0 = vector.load %arg1[%c0, %c0_0] : memref<4x256xf32, #tpu.memory_space<vmem>>, vector<4x256xf32>
    %c0_1 = arith.constant 0 : index
    %c0_2 = arith.constant 0 : index
    %1 = vector.load %arg6[%c0_1, %c0_2] : memref<9x256xf32, #tpu.memory_space<vmem>>, vector<9x256xf32>
    %c17_i32 = arith.constant 17 : i32
    %2 = tpu.dynamic_rotate %0 by %c17_i32 dim 1 : vector<4x256xf32>, i32 -> vector<4x256xf32>
    %3 = vector.extract_strided_slice %1 {offsets = [0, 0], sizes = [1, 256], strides = [1, 1]} : vector<9x256xf32> to vector<1x256xf32>
    %4 = vector.broadcast %3 : vector<1x256xf32> to vector<4x256xf32>
    %5 = arith.mulf %2, %4 : vector<4x256xf32>
    %c0_3 = arith.constant 0 : index
    %c0_4 = arith.constant 0 : index
    %c0_5 = arith.constant 0 : index
    %6 = vector.load %arg2[%c0_3, %c0_4, %c0_5] : memref<9x4x4xbf16, #tpu.memory_space<vmem>>, vector<1x4x4xbf16>
    %7 = vector.shape_cast %6 : vector<1x4x4xbf16> to vector<4x4xbf16>
    %8 = arith.truncf %5 : vector<4x256xf32> to vector<4x256xbf16>
    %cst = arith.constant dense<0.000000e+00> : vector<4x256xf32>
    %9 = tpu.matmul %7, %8, %cst {dimension_numbers = #tpu.dot_dimension_numbers<[1], [0], [0], [1], [0, 0, 1, 1], [], []>} : vector<4x4xbf16>, vector<4x256xbf16>, vector<4x256xf32> -> vector<4x256xf32>
    %c16_i32 = arith.constant 16 : i32
    %10 = tpu.dynamic_rotate %0 by %c16_i32 dim 1 : vector<4x256xf32>, i32 -> vector<4x256xf32>
    %11 = vector.extract_strided_slice %1 {offsets = [1, 0], sizes = [1, 256], strides = [1, 1]} : vector<9x256xf32> to vector<1x256xf32>
    %12 = vector.broadcast %11 : vector<1x256xf32> to vector<4x256xf32>
    %13 = arith.mulf %10, %12 : vector<4x256xf32>
    %c1 = arith.constant 1 : index
    %c0_6 = arith.constant 0 : index
    %c0_7 = arith.constant 0 : index
    %14 = vector.load %arg2[%c1, %c0_6, %c0_7] : memref<9x4x4xbf16, #tpu.memory_space<vmem>>, vector<1x4x4xbf16>
    %15 = vector.shape_cast %14 : vector<1x4x4xbf16> to vector<4x4xbf16>
    %16 = arith.truncf %13 : vector<4x256xf32> to vector<4x256xbf16>
    %cst_8 = arith.constant dense<0.000000e+00> : vector<4x256xf32>
    %17 = tpu.matmul %15, %16, %cst_8 {dimension_numbers = #tpu.dot_dimension_numbers<[1], [0], [0], [1], [0, 0, 1, 1], [], []>} : vector<4x4xbf16>, vector<4x256xbf16>, vector<4x256xf32> -> vector<4x256xf32>
    %18 = arith.addf %9, %17 : vector<4x256xf32>
    %c15_i32 = arith.constant 15 : i32
    %19 = tpu.dynamic_rotate %0 by %c15_i32 dim 1 : vector<4x256xf32>, i32 -> vector<4x256xf32>
    %20 = vector.extract_strided_slice %1 {offsets = [2, 0], sizes = [1, 256], strides = [1, 1]} : vector<9x256xf32> to vector<1x256xf32>
    %21 = vector.broadcast %20 : vector<1x256xf32> to vector<4x256xf32>
    %22 = arith.mulf %19, %21 : vector<4x256xf32>
    %c2 = arith.constant 2 : index
    %c0_9 = arith.constant 0 : index
    %c0_10 = arith.constant 0 : index
    %23 = vector.load %arg2[%c2, %c0_9, %c0_10] : memref<9x4x4xbf16, #tpu.memory_space<vmem>>, vector<1x4x4xbf16>
    %24 = vector.shape_cast %23 : vector<1x4x4xbf16> to vector<4x4xbf16>
    %25 = arith.truncf %22 : vector<4x256xf32> to vector<4x256xbf16>
    %cst_11 = arith.constant dense<0.000000e+00> : vector<4x256xf32>
    %26 = tpu.matmul %24, %25, %cst_11 {dimension_numbers = #tpu.dot_dimension_numbers<[1], [0], [0], [1], [0, 0, 1, 1], [], []>} : vector<4x4xbf16>, vector<4x256xbf16>, vector<4x256xf32> -> vector<4x256xf32>
    %27 = arith.addf %18, %26 : vector<4x256xf32>
    %c1_i32 = arith.constant 1 : i32
    %28 = tpu.dynamic_rotate %0 by %c1_i32 dim 1 : vector<4x256xf32>, i32 -> vector<4x256xf32>
    %29 = vector.extract_strided_slice %1 {offsets = [3, 0], sizes = [1, 256], strides = [1, 1]} : vector<9x256xf32> to vector<1x256xf32>
    %30 = vector.broadcast %29 : vector<1x256xf32> to vector<4x256xf32>
    %31 = arith.mulf %28, %30 : vector<4x256xf32>
    %c3 = arith.constant 3 : index
    %c0_12 = arith.constant 0 : index
    %c0_13 = arith.constant 0 : index
    %32 = vector.load %arg2[%c3, %c0_12, %c0_13] : memref<9x4x4xbf16, #tpu.memory_space<vmem>>, vector<1x4x4xbf16>
    %33 = vector.shape_cast %32 : vector<1x4x4xbf16> to vector<4x4xbf16>
    %34 = arith.truncf %31 : vector<4x256xf32> to vector<4x256xbf16>
    %cst_14 = arith.constant dense<0.000000e+00> : vector<4x256xf32>
    %35 = tpu.matmul %33, %34, %cst_14 {dimension_numbers = #tpu.dot_dimension_numbers<[1], [0], [0], [1], [0, 0, 1, 1], [], []>} : vector<4x4xbf16>, vector<4x256xbf16>, vector<4x256xf32> -> vector<4x256xf32>
    %36 = arith.addf %27, %35 : vector<4x256xf32>
    %c4 = arith.constant 4 : index
    %c0_15 = arith.constant 0 : index
    %c0_16 = arith.constant 0 : index
    %37 = vector.load %arg2[%c4, %c0_15, %c0_16] : memref<9x4x4xbf16, #tpu.memory_space<vmem>>, vector<1x4x4xbf16>
    %38 = vector.shape_cast %37 : vector<1x4x4xbf16> to vector<4x4xbf16>
    %39 = arith.truncf %0 : vector<4x256xf32> to vector<4x256xbf16>
    %cst_17 = arith.constant dense<0.000000e+00> : vector<4x256xf32>
    %40 = tpu.matmul %38, %39, %cst_17 {dimension_numbers = #tpu.dot_dimension_numbers<[1], [0], [0], [1], [0, 0, 1, 1], [], []>} : vector<4x4xbf16>, vector<4x256xbf16>, vector<4x256xf32> -> vector<4x256xf32>
    %41 = arith.addf %36, %40 : vector<4x256xf32>
    %c255_i32 = arith.constant 255 : i32
    %42 = tpu.dynamic_rotate %0 by %c255_i32 dim 1 : vector<4x256xf32>, i32 -> vector<4x256xf32>
    %43 = vector.extract_strided_slice %1 {offsets = [5, 0], sizes = [1, 256], strides = [1, 1]} : vector<9x256xf32> to vector<1x256xf32>
    %44 = vector.broadcast %43 : vector<1x256xf32> to vector<4x256xf32>
    %45 = arith.mulf %42, %44 : vector<4x256xf32>
    %c5 = arith.constant 5 : index
    %c0_18 = arith.constant 0 : index
    %c0_19 = arith.constant 0 : index
    %46 = vector.load %arg2[%c5, %c0_18, %c0_19] : memref<9x4x4xbf16, #tpu.memory_space<vmem>>, vector<1x4x4xbf16>
    %47 = vector.shape_cast %46 : vector<1x4x4xbf16> to vector<4x4xbf16>
    %48 = arith.truncf %45 : vector<4x256xf32> to vector<4x256xbf16>
    %cst_20 = arith.constant dense<0.000000e+00> : vector<4x256xf32>
    %49 = tpu.matmul %47, %48, %cst_20 {dimension_numbers = #tpu.dot_dimension_numbers<[1], [0], [0], [1], [0, 0, 1, 1], [], []>} : vector<4x4xbf16>, vector<4x256xbf16>, vector<4x256xf32> -> vector<4x256xf32>
    %50 = arith.addf %41, %49 : vector<4x256xf32>
    %c241_i32 = arith.constant 241 : i32
    %51 = tpu.dynamic_rotate %0 by %c241_i32 dim 1 : vector<4x256xf32>, i32 -> vector<4x256xf32>
    %52 = vector.extract_strided_slice %1 {offsets = [6, 0], sizes = [1, 256], strides = [1, 1]} : vector<9x256xf32> to vector<1x256xf32>
    %53 = vector.broadcast %52 : vector<1x256xf32> to vector<4x256xf32>
    %54 = arith.mulf %51, %53 : vector<4x256xf32>
    %c6 = arith.constant 6 : index
    %c0_21 = arith.constant 0 : index
    %c0_22 = arith.constant 0 : index
    %55 = vector.load %arg2[%c6, %c0_21, %c0_22] : memref<9x4x4xbf16, #tpu.memory_space<vmem>>, vector<1x4x4xbf16>
    %56 = vector.shape_cast %55 : vector<1x4x4xbf16> to vector<4x4xbf16>
    %57 = arith.truncf %54 : vector<4x256xf32> to vector<4x256xbf16>
    %cst_23 = arith.constant dense<0.000000e+00> : vector<4x256xf32>
    %58 = tpu.matmul %56, %57, %cst_23 {dimension_numbers = #tpu.dot_dimension_numbers<[1], [0], [0], [1], [0, 0, 1, 1], [], []>} : vector<4x4xbf16>, vector<4x256xbf16>, vector<4x256xf32> -> vector<4x256xf32>
    %59 = arith.addf %50, %58 : vector<4x256xf32>
    %c240_i32 = arith.constant 240 : i32
    %60 = tpu.dynamic_rotate %0 by %c240_i32 dim 1 : vector<4x256xf32>, i32 -> vector<4x256xf32>
    %61 = vector.extract_strided_slice %1 {offsets = [7, 0], sizes = [1, 256], strides = [1, 1]} : vector<9x256xf32> to vector<1x256xf32>
    %62 = vector.broadcast %61 : vector<1x256xf32> to vector<4x256xf32>
    %63 = arith.mulf %60, %62 : vector<4x256xf32>
    %c7 = arith.constant 7 : index
    %c0_24 = arith.constant 0 : index
    %c0_25 = arith.constant 0 : index
    %64 = vector.load %arg2[%c7, %c0_24, %c0_25] : memref<9x4x4xbf16, #tpu.memory_space<vmem>>, vector<1x4x4xbf16>
    %65 = vector.shape_cast %64 : vector<1x4x4xbf16> to vector<4x4xbf16>
    %66 = arith.truncf %63 : vector<4x256xf32> to vector<4x256xbf16>
    %cst_26 = arith.constant dense<0.000000e+00> : vector<4x256xf32>
    %67 = tpu.matmul %65, %66, %cst_26 {dimension_numbers = #tpu.dot_dimension_numbers<[1], [0], [0], [1], [0, 0, 1, 1], [], []>} : vector<4x4xbf16>, vector<4x256xbf16>, vector<4x256xf32> -> vector<4x256xf32>
    %68 = arith.addf %59, %67 : vector<4x256xf32>
    %c239_i32 = arith.constant 239 : i32
    %69 = tpu.dynamic_rotate %0 by %c239_i32 dim 1 : vector<4x256xf32>, i32 -> vector<4x256xf32>
    %70 = vector.extract_strided_slice %1 {offsets = [8, 0], sizes = [1, 256], strides = [1, 1]} : vector<9x256xf32> to vector<1x256xf32>
    %71 = vector.broadcast %70 : vector<1x256xf32> to vector<4x256xf32>
    %72 = arith.mulf %69, %71 : vector<4x256xf32>
    %c8 = arith.constant 8 : index
    %c0_27 = arith.constant 0 : index
    %c0_28 = arith.constant 0 : index
    %73 = vector.load %arg2[%c8, %c0_27, %c0_28] : memref<9x4x4xbf16, #tpu.memory_space<vmem>>, vector<1x4x4xbf16>
    %74 = vector.shape_cast %73 : vector<1x4x4xbf16> to vector<4x4xbf16>
    %75 = arith.truncf %72 : vector<4x256xf32> to vector<4x256xbf16>
    %cst_29 = arith.constant dense<0.000000e+00> : vector<4x256xf32>
    %76 = tpu.matmul %74, %75, %cst_29 {dimension_numbers = #tpu.dot_dimension_numbers<[1], [0], [0], [1], [0, 0, 1, 1], [], []>} : vector<4x4xbf16>, vector<4x256xbf16>, vector<4x256xf32> -> vector<4x256xf32>
    %77 = arith.addf %68, %76 : vector<4x256xf32>
    %c0_30 = arith.constant 0 : index
    %c0_31 = arith.constant 0 : index
    %78 = vector.load %arg4[%c0_30, %c0_31] : memref<4x1xf32, #tpu.memory_space<vmem>>, vector<4x1xf32>
    %79 = vector.broadcast %78 : vector<4x1xf32> to vector<4x256xf32>
    %80 = arith.addf %77, %79 : vector<4x256xf32>
    %cst_32 = arith.constant 0.000000e+00 : f32
    %81 = vector.broadcast %cst_32 : f32 to vector<4x256xf32>
    %82 = arith.maximumf %80, %81 : vector<4x256xf32>
    %c17_i32_33 = arith.constant 17 : i32
    %83 = tpu.dynamic_rotate %82 by %c17_i32_33 dim 1 : vector<4x256xf32>, i32 -> vector<4x256xf32>
    %84 = vector.extract_strided_slice %1 {offsets = [0, 0], sizes = [1, 256], strides = [1, 1]} : vector<9x256xf32> to vector<1x256xf32>
    %85 = vector.broadcast %84 : vector<1x256xf32> to vector<4x256xf32>
    %86 = arith.mulf %83, %85 : vector<4x256xf32>
    %c0_34 = arith.constant 0 : index
    %c0_35 = arith.constant 0 : index
    %c0_36 = arith.constant 0 : index
    %87 = vector.load %arg3[%c0_34, %c0_35, %c0_36] : memref<9x4x4xbf16, #tpu.memory_space<vmem>>, vector<1x4x4xbf16>
    %88 = vector.shape_cast %87 : vector<1x4x4xbf16> to vector<4x4xbf16>
    %89 = arith.truncf %86 : vector<4x256xf32> to vector<4x256xbf16>
    %cst_37 = arith.constant dense<0.000000e+00> : vector<4x256xf32>
    %90 = tpu.matmul %88, %89, %cst_37 {dimension_numbers = #tpu.dot_dimension_numbers<[1], [0], [0], [1], [0, 0, 1, 1], [], []>} : vector<4x4xbf16>, vector<4x256xbf16>, vector<4x256xf32> -> vector<4x256xf32>
    %c16_i32_38 = arith.constant 16 : i32
    %91 = tpu.dynamic_rotate %82 by %c16_i32_38 dim 1 : vector<4x256xf32>, i32 -> vector<4x256xf32>
    %92 = vector.extract_strided_slice %1 {offsets = [1, 0], sizes = [1, 256], strides = [1, 1]} : vector<9x256xf32> to vector<1x256xf32>
    %93 = vector.broadcast %92 : vector<1x256xf32> to vector<4x256xf32>
    %94 = arith.mulf %91, %93 : vector<4x256xf32>
    %c1_39 = arith.constant 1 : index
    %c0_40 = arith.constant 0 : index
    %c0_41 = arith.constant 0 : index
    %95 = vector.load %arg3[%c1_39, %c0_40, %c0_41] : memref<9x4x4xbf16, #tpu.memory_space<vmem>>, vector<1x4x4xbf16>
    %96 = vector.shape_cast %95 : vector<1x4x4xbf16> to vector<4x4xbf16>
    %97 = arith.truncf %94 : vector<4x256xf32> to vector<4x256xbf16>
    %cst_42 = arith.constant dense<0.000000e+00> : vector<4x256xf32>
    %98 = tpu.matmul %96, %97, %cst_42 {dimension_numbers = #tpu.dot_dimension_numbers<[1], [0], [0], [1], [0, 0, 1, 1], [], []>} : vector<4x4xbf16>, vector<4x256xbf16>, vector<4x256xf32> -> vector<4x256xf32>
    %99 = arith.addf %90, %98 : vector<4x256xf32>
    %c15_i32_43 = arith.constant 15 : i32
    %100 = tpu.dynamic_rotate %82 by %c15_i32_43 dim 1 : vector<4x256xf32>, i32 -> vector<4x256xf32>
    %101 = vector.extract_strided_slice %1 {offsets = [2, 0], sizes = [1, 256], strides = [1, 1]} : vector<9x256xf32> to vector<1x256xf32>
    %102 = vector.broadcast %101 : vector<1x256xf32> to vector<4x256xf32>
    %103 = arith.mulf %100, %102 : vector<4x256xf32>
    %c2_44 = arith.constant 2 : index
    %c0_45 = arith.constant 0 : index
    %c0_46 = arith.constant 0 : index
    %104 = vector.load %arg3[%c2_44, %c0_45, %c0_46] : memref<9x4x4xbf16, #tpu.memory_space<vmem>>, vector<1x4x4xbf16>
    %105 = vector.shape_cast %104 : vector<1x4x4xbf16> to vector<4x4xbf16>
    %106 = arith.truncf %103 : vector<4x256xf32> to vector<4x256xbf16>
    %cst_47 = arith.constant dense<0.000000e+00> : vector<4x256xf32>
    %107 = tpu.matmul %105, %106, %cst_47 {dimension_numbers = #tpu.dot_dimension_numbers<[1], [0], [0], [1], [0, 0, 1, 1], [], []>} : vector<4x4xbf16>, vector<4x256xbf16>, vector<4x256xf32> -> vector<4x256xf32>
    %108 = arith.addf %99, %107 : vector<4x256xf32>
    %c1_i32_48 = arith.constant 1 : i32
    %109 = tpu.dynamic_rotate %82 by %c1_i32_48 dim 1 : vector<4x256xf32>, i32 -> vector<4x256xf32>
    %110 = vector.extract_strided_slice %1 {offsets = [3, 0], sizes = [1, 256], strides = [1, 1]} : vector<9x256xf32> to vector<1x256xf32>
    %111 = vector.broadcast %110 : vector<1x256xf32> to vector<4x256xf32>
    %112 = arith.mulf %109, %111 : vector<4x256xf32>
    %c3_49 = arith.constant 3 : index
    %c0_50 = arith.constant 0 : index
    %c0_51 = arith.constant 0 : index
    %113 = vector.load %arg3[%c3_49, %c0_50, %c0_51] : memref<9x4x4xbf16, #tpu.memory_space<vmem>>, vector<1x4x4xbf16>
    %114 = vector.shape_cast %113 : vector<1x4x4xbf16> to vector<4x4xbf16>
    %115 = arith.truncf %112 : vector<4x256xf32> to vector<4x256xbf16>
    %cst_52 = arith.constant dense<0.000000e+00> : vector<4x256xf32>
    %116 = tpu.matmul %114, %115, %cst_52 {dimension_numbers = #tpu.dot_dimension_numbers<[1], [0], [0], [1], [0, 0, 1, 1], [], []>} : vector<4x4xbf16>, vector<4x256xbf16>, vector<4x256xf32> -> vector<4x256xf32>
    %117 = arith.addf %108, %116 : vector<4x256xf32>
    %c4_53 = arith.constant 4 : index
    %c0_54 = arith.constant 0 : index
    %c0_55 = arith.constant 0 : index
    %118 = vector.load %arg3[%c4_53, %c0_54, %c0_55] : memref<9x4x4xbf16, #tpu.memory_space<vmem>>, vector<1x4x4xbf16>
    %119 = vector.shape_cast %118 : vector<1x4x4xbf16> to vector<4x4xbf16>
    %120 = arith.truncf %82 : vector<4x256xf32> to vector<4x256xbf16>
    %cst_56 = arith.constant dense<0.000000e+00> : vector<4x256xf32>
    %121 = tpu.matmul %119, %120, %cst_56 {dimension_numbers = #tpu.dot_dimension_numbers<[1], [0], [0], [1], [0, 0, 1, 1], [], []>} : vector<4x4xbf16>, vector<4x256xbf16>, vector<4x256xf32> -> vector<4x256xf32>
    %122 = arith.addf %117, %121 : vector<4x256xf32>
    %c255_i32_57 = arith.constant 255 : i32
    %123 = tpu.dynamic_rotate %82 by %c255_i32_57 dim 1 : vector<4x256xf32>, i32 -> vector<4x256xf32>
    %124 = vector.extract_strided_slice %1 {offsets = [5, 0], sizes = [1, 256], strides = [1, 1]} : vector<9x256xf32> to vector<1x256xf32>
    %125 = vector.broadcast %124 : vector<1x256xf32> to vector<4x256xf32>
    %126 = arith.mulf %123, %125 : vector<4x256xf32>
    %c5_58 = arith.constant 5 : index
    %c0_59 = arith.constant 0 : index
    %c0_60 = arith.constant 0 : index
    %127 = vector.load %arg3[%c5_58, %c0_59, %c0_60] : memref<9x4x4xbf16, #tpu.memory_space<vmem>>, vector<1x4x4xbf16>
    %128 = vector.shape_cast %127 : vector<1x4x4xbf16> to vector<4x4xbf16>
    %129 = arith.truncf %126 : vector<4x256xf32> to vector<4x256xbf16>
    %cst_61 = arith.constant dense<0.000000e+00> : vector<4x256xf32>
    %130 = tpu.matmul %128, %129, %cst_61 {dimension_numbers = #tpu.dot_dimension_numbers<[1], [0], [0], [1], [0, 0, 1, 1], [], []>} : vector<4x4xbf16>, vector<4x256xbf16>, vector<4x256xf32> -> vector<4x256xf32>
    %131 = arith.addf %122, %130 : vector<4x256xf32>
    %c241_i32_62 = arith.constant 241 : i32
    %132 = tpu.dynamic_rotate %82 by %c241_i32_62 dim 1 : vector<4x256xf32>, i32 -> vector<4x256xf32>
    %133 = vector.extract_strided_slice %1 {offsets = [6, 0], sizes = [1, 256], strides = [1, 1]} : vector<9x256xf32> to vector<1x256xf32>
    %134 = vector.broadcast %133 : vector<1x256xf32> to vector<4x256xf32>
    %135 = arith.mulf %132, %134 : vector<4x256xf32>
    %c6_63 = arith.constant 6 : index
    %c0_64 = arith.constant 0 : index
    %c0_65 = arith.constant 0 : index
    %136 = vector.load %arg3[%c6_63, %c0_64, %c0_65] : memref<9x4x4xbf16, #tpu.memory_space<vmem>>, vector<1x4x4xbf16>
    %137 = vector.shape_cast %136 : vector<1x4x4xbf16> to vector<4x4xbf16>
    %138 = arith.truncf %135 : vector<4x256xf32> to vector<4x256xbf16>
    %cst_66 = arith.constant dense<0.000000e+00> : vector<4x256xf32>
    %139 = tpu.matmul %137, %138, %cst_66 {dimension_numbers = #tpu.dot_dimension_numbers<[1], [0], [0], [1], [0, 0, 1, 1], [], []>} : vector<4x4xbf16>, vector<4x256xbf16>, vector<4x256xf32> -> vector<4x256xf32>
    %140 = arith.addf %131, %139 : vector<4x256xf32>
    %c240_i32_67 = arith.constant 240 : i32
    %141 = tpu.dynamic_rotate %82 by %c240_i32_67 dim 1 : vector<4x256xf32>, i32 -> vector<4x256xf32>
    %142 = vector.extract_strided_slice %1 {offsets = [7, 0], sizes = [1, 256], strides = [1, 1]} : vector<9x256xf32> to vector<1x256xf32>
    %143 = vector.broadcast %142 : vector<1x256xf32> to vector<4x256xf32>
    %144 = arith.mulf %141, %143 : vector<4x256xf32>
    %c7_68 = arith.constant 7 : index
    %c0_69 = arith.constant 0 : index
    %c0_70 = arith.constant 0 : index
    %145 = vector.load %arg3[%c7_68, %c0_69, %c0_70] : memref<9x4x4xbf16, #tpu.memory_space<vmem>>, vector<1x4x4xbf16>
    %146 = vector.shape_cast %145 : vector<1x4x4xbf16> to vector<4x4xbf16>
    %147 = arith.truncf %144 : vector<4x256xf32> to vector<4x256xbf16>
    %cst_71 = arith.constant dense<0.000000e+00> : vector<4x256xf32>
    %148 = tpu.matmul %146, %147, %cst_71 {dimension_numbers = #tpu.dot_dimension_numbers<[1], [0], [0], [1], [0, 0, 1, 1], [], []>} : vector<4x4xbf16>, vector<4x256xbf16>, vector<4x256xf32> -> vector<4x256xf32>
    %149 = arith.addf %140, %148 : vector<4x256xf32>
    %c239_i32_72 = arith.constant 239 : i32
    %150 = tpu.dynamic_rotate %82 by %c239_i32_72 dim 1 : vector<4x256xf32>, i32 -> vector<4x256xf32>
    %151 = vector.extract_strided_slice %1 {offsets = [8, 0], sizes = [1, 256], strides = [1, 1]} : vector<9x256xf32> to vector<1x256xf32>
    %152 = vector.broadcast %151 : vector<1x256xf32> to vector<4x256xf32>
    %153 = arith.mulf %150, %152 : vector<4x256xf32>
    %c8_73 = arith.constant 8 : index
    %c0_74 = arith.constant 0 : index
    %c0_75 = arith.constant 0 : index
    %154 = vector.load %arg3[%c8_73, %c0_74, %c0_75] : memref<9x4x4xbf16, #tpu.memory_space<vmem>>, vector<1x4x4xbf16>
    %155 = vector.shape_cast %154 : vector<1x4x4xbf16> to vector<4x4xbf16>
    %156 = arith.truncf %153 : vector<4x256xf32> to vector<4x256xbf16>
    %cst_76 = arith.constant dense<0.000000e+00> : vector<4x256xf32>
    %157 = tpu.matmul %155, %156, %cst_76 {dimension_numbers = #tpu.dot_dimension_numbers<[1], [0], [0], [1], [0, 0, 1, 1], [], []>} : vector<4x4xbf16>, vector<4x256xbf16>, vector<4x256xf32> -> vector<4x256xf32>
    %158 = arith.addf %149, %157 : vector<4x256xf32>
    %c0_77 = arith.constant 0 : index
    %c0_78 = arith.constant 0 : index
    %159 = vector.load %arg5[%c0_77, %c0_78] : memref<4x1xf32, #tpu.memory_space<vmem>>, vector<4x1xf32>
    %160 = vector.broadcast %159 : vector<4x1xf32> to vector<4x256xf32>
    %161 = arith.addf %158, %160 : vector<4x256xf32>
    %162 = arith.addf %161, %0 : vector<4x256xf32>
    %cst_79 = arith.constant 0.000000e+00 : f32
    %163 = vector.broadcast %cst_79 : f32 to vector<4x256xf32>
    %164 = arith.maximumf %162, %163 : vector<4x256xf32>
    %c0_80 = arith.constant 0 : index
    %c0_81 = arith.constant 0 : index
    %165 = vector.load %arg7[%c0_80, %c0_81] : memref<4x256xf32, #tpu.memory_space<vmem>>, vector<4x256xf32>
    tpu.vector_store %arg7[%c0_80, %c0_81], %164 {strides = array<i32>} : memref<4x256xf32, #tpu.memory_space<vmem>>, vector<4x256xf32>,
    return
  }
  func.func @transform_0(%arg0: i32) -> (i32, i32) {
    %c0_i32 = arith.constant 0 : i32
    %c0_i32_0 = arith.constant 0 : i32
    return %c0_i32, %arg0 : i32, i32
  }
  func.func @transform_1(%arg0: i32) -> (i32, i32, i32) {
    %c0_i32 = arith.constant 0 : i32
    %c0_i32_0 = arith.constant 0 : i32
    %c0_i32_1 = arith.constant 0 : i32
    %c0_i32_2 = arith.constant 0 : i32
    return %c0_i32, %c0_i32_0, %c0_i32_1 : i32, i32, i32
  }
  func.func @transform_2(%arg0: i32) -> (i32, i32, i32) {
    %c0_i32 = arith.constant 0 : i32
    %c0_i32_0 = arith.constant 0 : i32
    %c0_i32_1 = arith.constant 0 : i32
    %c0_i32_2 = arith.constant 0 : i32
    return %c0_i32, %c0_i32_0, %c0_i32_1 : i32, i32, i32
  }
  func.func @transform_3(%arg0: i32) -> (i32, i32) {
    %c0_i32 = arith.constant 0 : i32
    %c0_i32_0 = arith.constant 0 : i32
    %c0_i32_1 = arith.constant 0 : i32
    return %c0_i32, %c0_i32_0 : i32, i32
  }
  func.func @transform_4(%arg0: i32) -> (i32, i32) {
    %c0_i32 = arith.constant 0 : i32
    %c0_i32_0 = arith.constant 0 : i32
    %c0_i32_1 = arith.constant 0 : i32
    return %c0_i32, %c0_i32_0 : i32, i32
  }
  func.func @transform_5(%arg0: i32) -> (i32, i32) {
    %c0_i32 = arith.constant 0 : i32
    %c0_i32_0 = arith.constant 0 : i32
    %c0_i32_1 = arith.constant 0 : i32
    return %c0_i32, %c0_i32_0 : i32, i32
  }
  func.func @transform_6(%arg0: i32) -> (i32, i32) {
    %c0_i32 = arith.constant 0 : i32
    %c0_i32_0 = arith.constant 0 : i32
    return %c0_i32, %arg0 : i32, i32
  }
}

</mosaic_0001>

<llo_original>
// kernel: tpu_custom_call.1
$region0: #{tpu_custom_call.1}
  #allocation0 [shape = 'u32[]', space=smem, size = 0x4, offset = 0x4, fixed_abs, tag = 'smem constant byte address 0x4 - core index']
  #allocation1 [shape = 'u32[144,128]{1,0:T(1,128)}', space=vmem, size = 0x12000, scoped, tag = 'internal scratch']
  %s0 = inlined_call_operand.vmem [shape: f32[4,512], index: 0, kind: input, shape index: {}]
  %s1 = inlined_call_operand.vmem [shape: bf16[9,4,4], index: 1, kind: input, shape index: {}]
  %s2 = inlined_call_operand.vmem [shape: bf16[9,4,4], index: 2, kind: input, shape index: {}]
  %s3 = inlined_call_operand.vmem [shape: f32[4,1], index: 3, kind: input, shape index: {}]
  %s4 = inlined_call_operand.vmem [shape: f32[4,1], index: 4, kind: input, shape index: {}]
  %s5 = inlined_call_operand.vmem [shape: f32[9,256], index: 5, kind: input, shape index: {}]
  %s6 = inlined_call_operand.hbm [shape: f32[4,512], index: 6, kind: output, shape index: {}]
  %s7 = sld [smem:[#allocation0]]
  $region57: #{tpu_custom_call.1} parent=0
    _
  %s9 = ssub.s32 1, %s7
  %s10 = scalar_select 0, %s9, %s7
  $region1: #{tpu_custom_call.1} parent=0
    #allocation2 [shape = 'u8[8192]{0}', space=vmem, size = 0x2000, scoped, tag = 'output window, operand 0']
    #allocation3 [shape = 's32[2]{0}', space=sflag, size = 0x8, scoped, tag = 'scoped memory for tpu_custom_call.1']
    %11 = vsyncpa [#allocation3], 0
    %s12 = scalar_lea.sflag [#allocation3], 1
    %13 = vsyncpa %s12, 0
    loop: start=0, step=1, limit=4
    $region2: #{tpu_custom_call.1} parent=1 // loop_pre_header
      _
    $region3: #{tpu_custom_call.1} parent=1 // loop_header
      %s15 = sphi 0, %s19
      %p16 = scmp.ge.s32.totalorder %s15, 4
      %s25 = sphi 0, %s27
      %s28 = sphi 0, %s25
      %s29 = sphi 0, %s28
      %s45 = sphi 0, %s29
      %s49 = sphi 0, %s49
      %s51 = sphi 0, %s49
      %s52 = sphi 0, %s51
      %s66 = sphi 0, %s52
      %s70 = sphi 0, %s70
      %s72 = sphi 0, %s70
      %s73 = sphi 0, %s72
      %s87 = sphi 0, %s73
      %s91 = sphi 0, %s91
      %s93 = sphi 0, %s91
      %s94 = sphi 0, %s93
      %s108 = sphi 0, %s94
      %s112 = sphi 0, %s112
      %s114 = sphi 0, %s112
      %s115 = sphi 0, %s114
      %s129 = sphi 0, %s115
      %s133 = sphi 0, %s133
      %s135 = sphi 0, %s133
      %s136 = sphi 0, %s135
      %s150 = sphi 0, %s136
      %s156 = sphi 0, %s158
      %s159 = sphi 0, %s156
      %s160 = sphi 0, %s159
      %s176 = sphi 0, %s160
    $region4: #{tpu_custom_call.1} parent=1 // loop_header_branch
      %18 = sbr.rel (%p16) target = $region8
    $region5: #{tpu_custom_call.1} parent=1 // loop_body
      %s20 = ssub.s32 %s15, 1
      %s21 = ssub.s32 %s15, 2
      %s22 = sadd.s32 %s15, 1
      %s23 = ssub.s32 %s15, %s22
      %p24 = scmp.eq.s32.totalorder %s23, 0
      %s26 = sadd.s32 %s25, 1
      %s27 = scalar_select %p24, %s25, %s26
      %p30 = pneg %p24
      %p31 = scmp.eq.s32.totalorder %s15, 1
      %p32 = por %p30, %p31
      %p33 = scmp.ne.s32.totalorder %s25, %s28
      %p34 = scmp.eq.s32.totalorder %s15, 0
      %p35 = por %p33, %p34
      %p36 = scmp.ne.s32.totalorder %s25, %s28
      %p37 = scmp.eq.s32.totalorder %s20, 1
      %p38 = por %p36, %p37
      %p39 = scmp.ne.s32.totalorder %s28, %s29
      %p40 = scmp.eq.s32.totalorder %s20, 0
      %p41 = por %p39, %p40
      %p42 = scmp.ne.s32.totalorder %s28, %s29
      %p43 = scmp.eq.s32.totalorder %s21, 1
      %p44 = por %p42, %p43
      %p46 = scmp.ne.s32.totalorder %s29, %s45
      %p47 = scmp.eq.s32.totalorder %s21, 0
      %p48 = por %p46, %p47
      %s50 = sadd.s32 %s49, 1
      %p53 = scmp.eq.s32.totalorder %s15, 1
      %p54 = scmp.ne.s32.totalorder %s49, %s51
      %p55 = scmp.eq.s32.totalorder %s15, 0
      %p56 = por %p54, %p55
      %p57 = scmp.ne.s32.totalorder %s49, %s51
      %p58 = scmp.eq.s32.totalorder %s20, 1
      %p59 = por %p57, %p58
      %p60 = scmp.ne.s32.totalorder %s51, %s52
      %p61 = scmp.eq.s32.totalorder %s20, 0
      %p62 = por %p60, %p61
      %p63 = scmp.ne.s32.totalorder %s51, %s52
      %p64 = scmp.eq.s32.totalorder %s21, 1
      %p65 = por %p63, %p64
      %p67 = scmp.ne.s32.totalorder %s52, %s66
      %p68 = scmp.eq.s32.totalorder %s21, 0
      %p69 = por %p67, %p68
      %s71 = sadd.s32 %s70, 1
      %p74 = scmp.eq.s32.totalorder %s15, 1
      %p75 = scmp.ne.s32.totalorder %s70, %s72
      %p76 = scmp.eq.s32.totalorder %s15, 0
      %p77 = por %p75, %p76
      %p78 = scmp.ne.s32.totalorder %s70, %s72
      %p79 = scmp.eq.s32.totalorder %s20, 1
      %p80 = por %p78, %p79
      %p81 = scmp.ne.s32.totalorder %s72, %s73
      %p82 = scmp.eq.s32.totalorder %s20, 0
      %p83 = por %p81, %p82
      %p84 = scmp.ne.s32.totalorder %s72, %s73
      %p85 = scmp.eq.s32.totalorder %s21, 1
      %p86 = por %p84, %p85
      %p88 = scmp.ne.s32.totalorder %s73, %s87
      %p89 = scmp.eq.s32.totalorder %s21, 0
      %p90 = por %p88, %p89
      %s92 = sadd.s32 %s91, 1
      %p95 = scmp.eq.s32.totalorder %s15, 1
      %p96 = scmp.ne.s32.totalorder %s91, %s93
      %p97 = scmp.eq.s32.totalorder %s15, 0
      %p98 = por %p96, %p97
      %p99 = scmp.ne.s32.totalorder %s91, %s93
      %p100 = scmp.eq.s32.totalorder %s20, 1
      %p101 = por %p99, %p100
      %p102 = scmp.ne.s32.totalorder %s93, %s94
      %p103 = scmp.eq.s32.totalorder %s20, 0
      %p104 = por %p102, %p103
      %p105 = scmp.ne.s32.totalorder %s93, %s94
      %p106 = scmp.eq.s32.totalorder %s21, 1
      %p107 = por %p105, %p106
      %p109 = scmp.ne.s32.totalorder %s94, %s108
      %p110 = scmp.eq.s32.totalorder %s21, 0
      %p111 = por %p109, %p110
      %s113 = sadd.s32 %s112, 1
      %p116 = scmp.eq.s32.totalorder %s15, 1
      %p117 = scmp.ne.s32.totalorder %s112, %s114
      %p118 = scmp.eq.s32.totalorder %s15, 0
      %p119 = por %p117, %p118
      %p120 = scmp.ne.s32.totalorder %s112, %s114
      %p121 = scmp.eq.s32.totalorder %s20, 1
      %p122 = por %p120, %p121
      %p123 = scmp.ne.s32.totalorder %s114, %s115
      %p124 = scmp.eq.s32.totalorder %s20, 0
      %p125 = por %p123, %p124
      %p126 = scmp.ne.s32.totalorder %s114, %s115
      %p127 = scmp.eq.s32.totalorder %s21, 1
      %p128 = por %p126, %p127
      %p130 = scmp.ne.s32.totalorder %s115, %s129
      %p131 = scmp.eq.s32.totalorder %s21, 0
      %p132 = por %p130, %p131
      %s134 = sadd.s32 %s133, 1
      %p137 = scmp.eq.s32.totalorder %s15, 1
      %p138 = scmp.ne.s32.totalorder %s133, %s135
      %p139 = scmp.eq.s32.totalorder %s15, 0
      %p140 = por %p138, %p139
      %p141 = scmp.ne.s32.totalorder %s133, %s135
      %p142 = scmp.eq.s32.totalorder %s20, 1
      %p143 = por %p141, %p142
      %p144 = scmp.ne.s32.totalorder %s135, %s136
      %p145 = scmp.eq.s32.totalorder %s20, 0
      %p146 = por %p144, %p145
      %p147 = scmp.ne.s32.totalorder %s135, %s136
      %p148 = scmp.eq.s32.totalorder %s21, 1
      %p149 = por %p147, %p148
      %p151 = scmp.ne.s32.totalorder %s136, %s150
      %p152 = scmp.eq.s32.totalorder %s21, 0
      %p153 = por %p151, %p152
      %s154 = ssub.s32 %s15, %s22
      %p155 = scmp.eq.s32.totalorder %s154, 0
      %s157 = sadd.s32 %s156, 1
      %s158 = scalar_select %p155, %s156, %s157
      %p161 = pneg %p155
      %p162 = scmp.eq.s32.totalorder %s15, 1
      %p163 = por %p161, %p162
      %p164 = scmp.ne.s32.totalorder %s156, %s159
      %p165 = scmp.eq.s32.totalorder %s15, 0
      %p166 = por %p164, %p165
      %p167 = scmp.ne.s32.totalorder %s156, %s159
      %p168 = scmp.eq.s32.totalorder %s20, 1
      %p169 = por %p167, %p168
      %p170 = scmp.ne.s32.totalorder %s159, %s160
      %p171 = scmp.eq.s32.totalorder %s20, 0
      %p172 = por %p170, %p171
      %p173 = scmp.ne.s32.totalorder %s159, %s160
      %p174 = scmp.eq.s32.totalorder %s21, 1
      %p175 = por %p173, %p174
      %p177 = scmp.ne.s32.totalorder %s160, %s176
      %p178 = scmp.eq.s32.totalorder %s21, 0
      %p179 = por %p177, %p178
      %p180 = scmp.le.s32.totalorder 1, %s15
      %p181 = scmp.lt.s32.totalorder %s15, 3
      %p182 = pnand %p180, %p181
      %p183 = pneg %p182
      // Predicated region
      $region9: #{tpu_custom_call.1} parent=5 // pred_check
        _
      $region10: #{tpu_custom_call.1} parent=5 // pred_check_branch
        %185 = sbr.rel (%p182) target = $region12
      $region11: #{tpu_custom_call.1} parent=5 // pred_region
        %s186 = ssub.s32 %s15, 1
        // Predicated region
        $region13: #{tpu_custom_call.1} parent=11 // pred_check
          %p187 = pneg %p62
        $region14: #{tpu_custom_call.1} parent=11 // pred_check_branch
          %189 = sbr.rel (%p187) target = $region16
        $region15: #{tpu_custom_call.1} parent=11 // pred_region
          _
        $region16: #{tpu_custom_call.1} parent=11 // pred_fallthru
          _
        // Predicated region
        $region17: #{tpu_custom_call.1} parent=11 // pred_check
          %p190 = pneg %p83
        $region18: #{tpu_custom_call.1} parent=11 // pred_check_branch
          %192 = sbr.rel (%p190) target = $region20
        $region19: #{tpu_custom_call.1} parent=11 // pred_region
          _
        $region20: #{tpu_custom_call.1} parent=11 // pred_fallthru
          _
        // Predicated region
        $region21: #{tpu_custom_call.1} parent=11 // pred_check
          %p193 = pneg %p104
        $region22: #{tpu_custom_call.1} parent=11 // pred_check_branch
          %195 = sbr.rel (%p193) target = $region24
        $region23: #{tpu_custom_call.1} parent=11 // pred_region
          _
        $region24: #{tpu_custom_call.1} parent=11 // pred_fallthru
          _
        // Predicated region
        $region25: #{tpu_custom_call.1} parent=11 // pred_check
          %p196 = pneg %p125
        $region26: #{tpu_custom_call.1} parent=11 // pred_check_branch
          %198 = sbr.rel (%p196) target = $region28
        $region27: #{tpu_custom_call.1} parent=11 // pred_region
          _
        $region28: #{tpu_custom_call.1} parent=11 // pred_fallthru
          _
        // Predicated region
        $region29: #{tpu_custom_call.1} parent=11 // pred_check
          %p199 = pneg %p146
        $region30: #{tpu_custom_call.1} parent=11 // pred_check_branch
          %201 = sbr.rel (%p199) target = $region32
        $region31: #{tpu_custom_call.1} parent=11 // pred_region
          _
        $region32: #{tpu_custom_call.1} parent=11 // pred_fallthru
          _
      $region12: #{tpu_custom_call.1} parent=5 // pred_fallthru
        _
      %p202 = scmp.lt.s32.totalorder %s15, 2
      // Predicated region
      $region33: #{tpu_custom_call.1} parent=5 // pred_check
        %p203 = pneg %p202
      $region34: #{tpu_custom_call.1} parent=5 // pred_check_branch
        %205 = sbr.rel (%p203) target = $region36
      $region35: #{tpu_custom_call.1} parent=5 // pred_region
        // Predicated region
        $region37: #{tpu_custom_call.1} parent=35 // pred_check
          %p206 = pneg %p35
        $region38: #{tpu_custom_call.1} parent=35 // pred_check_branch
          %208 = sbr.rel (%p206) target = $region40
        $region39: #{tpu_custom_call.1} parent=35 // pred_region
          %s209 = smul.u32 2, %s15
          %p210 = scmp.lt.s32.totalorder %s209, 3
          %s211 = scalar_select %p210, %s209, 3
          %s212 = smul.addr %s211, 4
          %s213 = scalar_lea.vmem %s0, %s212
          %s214 = smul.u32 2, %s15
        $region40: #{tpu_custom_call.1} parent=35 // pred_fallthru
          _
      $region36: #{tpu_custom_call.1} parent=5 // pred_fallthru
        _
      %p215 = scmp.le.s32.totalorder 1, %s15
      %p216 = scmp.lt.s32.totalorder %s15, 3
      %p217 = pnand %p215, %p216
      %p218 = pneg %p217
      // Predicated region
      $region41: #{tpu_custom_call.1} parent=5 // pred_check
        _
      $region42: #{tpu_custom_call.1} parent=5 // pred_check_branch
        %220 = sbr.rel (%p217) target = $region44
      $region43: #{tpu_custom_call.1} parent=5 // pred_region
        %s221 = ssub.s32 %s15, 1
        %s222 = smul.u32 2, %s20
        %p223 = scmp.lt.s32.totalorder %s222, 3
        %s224 = scalar_select %p223, %s222, 3
        %s225 = smul.addr %s224, 4
        %s226 = scalar_lea.vmem %s0, %s225
        %p227 = pneg %p41
        %p228 = pneg %p38
        %p229 = pneg %p62
        %p230 = pneg %p59
        %p231 = pneg %p83
        %p232 = pneg %p80
        %p233 = pneg %p104
        %p234 = pneg %p101
        %p235 = pneg %p125
        %p236 = pneg %p122
        %p237 = pneg %p146
        %p238 = pneg %p143
        %p239 = pneg %p172
        %p240 = pneg %p169
        %s241 = sand.u32 %s159, 1
        %s242 = scalar_lea.sflag [#allocation3], %s241
        %s243 = sand.u32 %s159, 1
        %s244 = smul.addr %s243, 8
        %s245 = scalar_lea.vmem [#allocation2], %s244
        %s246 = smul.u32 2, %s20
        %p247 = scmp.lt.s32.totalorder %s246, 3
        %s248 = scalar_select %p247, %s246, 3
        %s249 = smul.addr %s248, 4
        %s250 = scalar_lea.vmem %s0, %s249
        %s251 = smul.u32 2, %s20
        %s252 = smul.u32 2, %s20
        %v254 = vld [vmem:[%s250] sm:$0xff]
        %v255 = vld [vmem:[%s5] sm:$0xff]
        %v256 = vld [vmem:[%s5 + $0x8] sm:$0xff]
        %v257 = vld [vmem:[%s5 + $0x10] sm:$0x1]
        %v258 = vld [vmem:[%s5 + $0x18] sm:$0x1]
        %v260 = vcombine.high %v254, %v254
        %262 = vrot.lane.b32.xlu0 %v254, 17
        %v263 = vpop.permute.xlu0 %262
        %264 = vrot.lane.b32.xlu0 %v260, 17
        %v265 = vpop.permute.xlu0 %264
        %v266 = vlaneseq
        %v267 = vand.u32 %v266, 127
        %vm268 = vcmp.lt.s32.totalorder %v267, 17
        %v269 = vsel %vm268, %v263, %v265
        %v270 = vsel %vm268, %v265, %v263
        %v271 = vlaneseq
        %v272 = vshrl.u32 %v271, 7
        %v273 = vsub.s32 0, %v272
        %v274 = vrot.slane %v255, %v273
        %v275 = vlaneseq
        %v276 = vshrl.u32 %v275, 7
        %v277 = vsub.s32 0, %v276
        %v278 = vrot.slane %v256, %v277
        %v279 = vmul.f32 %v270, %v274
        %v280 = vmul.f32 %v269, %v278
        %v281 = vld [vmem:[%s1] sm:$0x3]
        %v282 = vpack.c.bf16 %v279, %v279
        %v283 = vpack.c.bf16 %v280, %v280
        %284 = vrot.lane.b32.xlu0 %v254, 16
        %v285 = vpop.permute.xlu0 %284
        %286 = vrot.lane.b32.xlu0 %v260, 16
        %v287 = vpop.permute.xlu0 %286
        %vm288 = vcmp.lt.s32.totalorder %v267, 16
        %v289 = vsel %vm288, %v285, %v287
        %v290 = vsel %vm288, %v287, %v285
        %v291 = vlaneseq
        %v292 = vshrl.u32 %v291, 7
        %v293 = vsub.s32 1, %v292
        %v294 = vrot.slane %v255, %v293
        %v295 = vlaneseq
        %v296 = vshrl.u32 %v295, 7
        %v297 = vsub.s32 1, %v296
        %v298 = vrot.slane %v256, %v297
        %v299 = vmul.f32 %v290, %v294
        %v300 = vmul.f32 %v289, %v298
        %s301 = scalar_lea.vmem %s1, 2
        %v302 = vld [vmem:[%s301] sm:$0x3]
        %v303 = vpack.c.bf16 %v299, %v299
        %v304 = vpack.c.bf16 %v300, %v300
        %vm305 = vcmask 31744
        %v307 = vsel %vm305, %v302, 0
        %vm309 = vcmask 1041408
        %v311 = vsel %vm309, %v303, 0
        %v314 = vsel %vm309, %v304, 0
        %316 = vmatprep.subr.bf16.mxu0 %v314
        %317 = vmatpush1.bf16.msra.mxu0 %v311
        %318 = vmatprep.subr.bf16.mxu0 0
        %319 = vmatpush1.bf16.msra.mxu0 0
        %320 = vmatprep.subr.bf16.mxu0 0
        %321 = vmatpush1.bf16.msra.mxu0 0
        %322 = vmatprep.subr.bf16.mxu0 0
        %323 = vmatpush1.bf16.msra.mxu0 0
        %324 = vmatprep.subr.bf16.mxu0 0
        %325 = vmatpush1.bf16.msra.mxu0 0
        %326 = vmatprep.subr.bf16.mxu0 0
        %327 = vmatpush1.bf16.msra.mxu0 0
        %328 = vmatprep.subr.bf16.mxu0 0
        %329 = vmatpush1.bf16.msra.mxu0 0
        %330 = vmatprep.subr.bf16.mxu0 0
        %331 = vmatpush1.bf16.msra.mxu0 0
        %332 = vmatprep.subr.bf16.mxu0 0
        %333 = vmatpush1.bf16.msra.mxu0 0
        %334 = vmatprep.subr.bf16.mxu0 0
        %335 = vmatpush1.bf16.msra.mxu0 0
        %336 = vmatprep.subr.bf16.mxu0 0
        %337 = vmatpush1.bf16.msra.mxu0 0
        %338 = vmatprep.subr.bf16.mxu0 0
        %339 = vmatpush1.bf16.msra.mxu0 0
        %340 = vmatprep.subr.bf16.mxu0 0
        %341 = vmatpush1.bf16.msra.mxu0 0
        %342 = vmatprep.subr.bf16.mxu0 0
        %343 = vmatpush1.bf16.msra.mxu0 0
        %344 = vmatprep.subr.bf16.mxu0 0
        %345 = vmatpush1.bf16.msra.mxu0 0
        %346 = vmatprep.subr.bf16.mxu0 0
        %347 = vmatpush1.bf16.msra.mxu0 0
        %348 = vmatprep.mubr.bf16.mxu0 0
        %349 = vmatmul.mubr.bf16.gmra.mrb[0].mxu0 %v307
        %v350 = vpop.f32.mrb[0].mxu0
        %v351 = vadd.f32 0.0, %v350
        %v352 = vpop.f32.mrb[0].mxu0
        %v353 = vadd.f32 0.0, %v352
        %v354 = vpop.f32.mrb[0].mxu0
        %v355 = vpop.f32.mrb[0].mxu0
        %356 = vdwg.mxu0
        %v358 = vsel %vm305, %v281, 0
        %v361 = vsel %vm309, %v282, 0
        %v364 = vsel %vm309, %v283, 0
        %366 = vmatprep.subr.bf16.mxu0 %v364
        %367 = vmatpush1.bf16.msra.mxu0 %v361
        %368 = vmatprep.subr.bf16.mxu0 0
        %369 = vmatpush1.bf16.msra.mxu0 0
        %370 = vmatprep.subr.bf16.mxu0 0
        %371 = vmatpush1.bf16.msra.mxu0 0
        %372 = vmatprep.subr.bf16.mxu0 0
        %373 = vmatpush1.bf16.msra.mxu0 0
        %374 = vmatprep.subr.bf16.mxu0 0
        %375 = vmatpush1.bf16.msra.mxu0 0
        %376 = vmatprep.subr.bf16.mxu0 0
        %377 = vmatpush1.bf16.msra.mxu0 0
        %378 = vmatprep.subr.bf16.mxu0 0
        %379 = vmatpush1.bf16.msra.mxu0 0
        %380 = vmatprep.subr.bf16.mxu0 0
        %381 = vmatpush1.bf16.msra.mxu0 0
        %382 = vmatprep.subr.bf16.mxu0 0
        %383 = vmatpush1.bf16.msra.mxu0 0
        %384 = vmatprep.subr.bf16.mxu0 0
        %385 = vmatpush1.bf16.msra.mxu0 0
        %386 = vmatprep.subr.bf16.mxu0 0
        %387 = vmatpush1.bf16.msra.mxu0 0
        %388 = vmatprep.subr.bf16.mxu0 0
        %389 = vmatpush1.bf16.msra.mxu0 0
        %390 = vmatprep.subr.bf16.mxu0 0
        %391 = vmatpush1.bf16.msra.mxu0 0
        %392 = vmatprep.subr.bf16.mxu0 0
        %393 = vmatpush1.bf16.msra.mxu0 0
        %394 = vmatprep.subr.bf16.mxu0 0
        %395 = vmatpush1.bf16.msra.mxu0 0
        %396 = vmatprep.subr.bf16.mxu0 0
        %397 = vmatpush1.bf16.msra.mxu0 0
        %398 = vmatprep.mubr.bf16.mxu0 0
        %399 = vmatmul.mubr.bf16.gmra.mrb[0].mxu0 %v358
        %v400 = vpop.f32.mrb[0].mxu0
        %v401 = vadd.f32 %v351, %v400
        %v402 = vpop.f32.mrb[0].mxu0
        %v403 = vadd.f32 %v353, %v402
        %v404 = vpop.f32.mrb[0].mxu0
        %v405 = vpop.f32.mrb[0].mxu0
        %406 = vdwg.mxu0
        %407 = vrot.lane.b32.xlu0 %v254, 15
        %v408 = vpop.permute.xlu0 %407
        %409 = vrot.lane.b32.xlu0 %v260, 15
        %v410 = vpop.permute.xlu0 %409
        %vm411 = vcmp.lt.s32.totalorder %v267, 15
        %v412 = vsel %vm411, %v408, %v410
        %v413 = vsel %vm411, %v410, %v408
        %v414 = vlaneseq
        %v415 = vshrl.u32 %v414, 7
        %v416 = vsub.s32 2, %v415
        %v417 = vrot.slane %v255, %v416
        %v418 = vlaneseq
        %v419 = vshrl.u32 %v418, 7
        %v420 = vsub.s32 2, %v419
        %v421 = vrot.slane %v256, %v420
        %v422 = vmul.f32 %v413, %v417
        %v423 = vmul.f32 %v412, %v421
        %s424 = scalar_lea.vmem %s1, 4
        %v425 = vld [vmem:[%s424] sm:$0x3]
        %v426 = vpack.c.bf16 %v422, %v422
        %v427 = vpack.c.bf16 %v423, %v423
        %v429 = vsel %vm305, %v425, 0
        %v432 = vsel %vm309, %v426, 0
        %v435 = vsel %vm309, %v427, 0
        %437 = vmatprep.subr.bf16.mxu0 %v435
        %438 = vmatpush1.bf16.msra.mxu0 %v432
        %439 = vmatprep.subr.bf16.mxu0 0
        %440 = vmatpush1.bf16.msra.mxu0 0
        %441 = vmatprep.subr.bf16.mxu0 0
        %442 = vmatpush1.bf16.msra.mxu0 0
        %443 = vmatprep.subr.bf16.mxu0 0
        %444 = vmatpush1.bf16.msra.mxu0 0
        %445 = vmatprep.subr.bf16.mxu0 0
        %446 = vmatpush1.bf16.msra.mxu0 0
        %447 = vmatprep.subr.bf16.mxu0 0
        %448 = vmatpush1.bf16.msra.mxu0 0
        %449 = vmatprep.subr.bf16.mxu0 0
        %450 = vmatpush1.bf16.msra.mxu0 0
        %451 = vmatprep.subr.bf16.mxu0 0
        %452 = vmatpush1.bf16.msra.mxu0 0
        %453 = vmatprep.subr.bf16.mxu0 0
        %454 = vmatpush1.bf16.msra.mxu0 0
        %455 = vmatprep.subr.bf16.mxu0 0
        %456 = vmatpush1.bf16.msra.mxu0 0
        %457 = vmatprep.subr.bf16.mxu0 0
        %458 = vmatpush1.bf16.msra.mxu0 0
        %459 = vmatprep.subr.bf16.mxu0 0
        %460 = vmatpush1.bf16.msra.mxu0 0
        %461 = vmatprep.subr.bf16.mxu0 0
        %462 = vmatpush1.bf16.msra.mxu0 0
        %463 = vmatprep.subr.bf16.mxu0 0
        %464 = vmatpush1.bf16.msra.mxu0 0
        %465 = vmatprep.subr.bf16.mxu0 0
        %466 = vmatpush1.bf16.msra.mxu0 0
        %467 = vmatprep.subr.bf16.mxu0 0
        %468 = vmatpush1.bf16.msra.mxu0 0
        %469 = vmatprep.mubr.bf16.mxu0 0
        %470 = vmatmul.mubr.bf16.gmra.mrb[0].mxu0 %v429
        %v471 = vpop.f32.mrb[0].mxu0
        %v472 = vadd.f32 0.0, %v471
        %v473 = vpop.f32.mrb[0].mxu0
        %v474 = vadd.f32 0.0, %v473
        %v475 = vpop.f32.mrb[0].mxu0
        %v476 = vpop.f32.mrb[0].mxu0
        %477 = vdwg.mxu0
        %v478 = vadd.f32 %v401, %v472
        %v479 = vadd.f32 %v403, %v474
        %480 = vrot.lane.b32.xlu0 %v254, 1
        %v481 = vpop.permute.xlu0 %480
        %482 = vrot.lane.b32.xlu0 %v260, 1
        %v483 = vpop.permute.xlu0 %482
        %vm484 = vcmp.lt.s32.totalorder %v267, 1
        %v485 = vsel %vm484, %v481, %v483
        %v486 = vsel %vm484, %v483, %v481
        %v487 = vlaneseq
        %v488 = vshrl.u32 %v487, 7
        %v489 = vsub.s32 3, %v488
        %v490 = vrot.slane %v255, %v489
        %v491 = vlaneseq
        %v492 = vshrl.u32 %v491, 7
        %v493 = vsub.s32 3, %v492
        %v494 = vrot.slane %v256, %v493
        %v495 = vmul.f32 %v486, %v490
        %v496 = vmul.f32 %v485, %v494
        %s497 = scalar_lea.vmem %s1, 6
        %v498 = vld [vmem:[%s497] sm:$0x3]
        %v499 = vpack.c.bf16 %v495, %v495
        %v500 = vpack.c.bf16 %v496, %v496
        %v502 = vsel %vm305, %v498, 0
        %v505 = vsel %vm309, %v499, 0
        %v508 = vsel %vm309, %v500, 0
        %510 = vmatprep.subr.bf16.mxu0 %v508
        %511 = vmatpush1.bf16.msra.mxu0 %v505
        %512 = vmatprep.subr.bf16.mxu0 0
        %513 = vmatpush1.bf16.msra.mxu0 0
        %514 = vmatprep.subr.bf16.mxu0 0
        %515 = vmatpush1.bf16.msra.mxu0 0
        %516 = vmatprep.subr.bf16.mxu0 0
        %517 = vmatpush1.bf16.msra.mxu0 0
        %518 = vmatprep.subr.bf16.mxu0 0
        %519 = vmatpush1.bf16.msra.mxu0 0
        %520 = vmatprep.subr.bf16.mxu0 0
        %521 = vmatpush1.bf16.msra.mxu0 0
        %522 = vmatprep.subr.bf16.mxu0 0
        %523 = vmatpush1.bf16.msra.mxu0 0
        %524 = vmatprep.subr.bf16.mxu0 0
        %525 = vmatpush1.bf16.msra.mxu0 0
        %526 = vmatprep.subr.bf16.mxu0 0
        %527 = vmatpush1.bf16.msra.mxu0 0
        %528 = vmatprep.subr.bf16.mxu0 0
        %529 = vmatpush1.bf16.msra.mxu0 0
        %530 = vmatprep.subr.bf16.mxu0 0
        %531 = vmatpush1.bf16.msra.mxu0 0
        %532 = vmatprep.subr.bf16.mxu0 0
        %533 = vmatpush1.bf16.msra.mxu0 0
        %534 = vmatprep.subr.bf16.mxu0 0
        %535 = vmatpush1.bf16.msra.mxu0 0
        %536 = vmatprep.subr.bf16.mxu0 0
        %537 = vmatpush1.bf16.msra.mxu0 0
        %538 = vmatprep.subr.bf16.mxu0 0
        %539 = vmatpush1.bf16.msra.mxu0 0
        %540 = vmatprep.subr.bf16.mxu0 0
        %541 = vmatpush1.bf16.msra.mxu0 0
        %542 = vmatprep.mubr.bf16.mxu0 0
        %543 = vmatmul.mubr.bf16.gmra.mrb[0].mxu0 %v502
        %v544 = vpop.f32.mrb[0].mxu0
        %v545 = vadd.f32 0.0, %v544
        %v546 = vpop.f32.mrb[0].mxu0
        %v547 = vadd.f32 0.0, %v546
        %v548 = vpop.f32.mrb[0].mxu0
        %v549 = vpop.f32.mrb[0].mxu0
        %550 = vdwg.mxu0
        %v551 = vadd.f32 %v478, %v545
        %v552 = vadd.f32 %v479, %v547
        %s553 = scalar_lea.vmem %s1, 8
        %v554 = vld [vmem:[%s553] sm:$0x3]
        %v555 = vpack.c.bf16 %v254, %v254
        %v556 = vpack.c.bf16 %v260, %v260
        %v558 = vsel %vm305, %v554, 0
        %v561 = vsel %vm309, %v555, 0
        %v564 = vsel %vm309, %v556, 0
        %566 = vmatprep.subr.bf16.mxu0 %v564
        %567 = vmatpush1.bf16.msra.mxu0 %v561
        %568 = vmatprep.subr.bf16.mxu0 0
        %569 = vmatpush1.bf16.msra.mxu0 0
        %570 = vmatprep.subr.bf16.mxu0 0
        %571 = vmatpush1.bf16.msra.mxu0 0
        %572 = vmatprep.subr.bf16.mxu0 0
        %573 = vmatpush1.bf16.msra.mxu0 0
        %574 = vmatprep.subr.bf16.mxu0 0
        %575 = vmatpush1.bf16.msra.mxu0 0
        %576 = vmatprep.subr.bf16.mxu0 0
        %577 = vmatpush1.bf16.msra.mxu0 0
        %578 = vmatprep.subr.bf16.mxu0 0
        %579 = vmatpush1.bf16.msra.mxu0 0
        %580 = vmatprep.subr.bf16.mxu0 0
        %581 = vmatpush1.bf16.msra.mxu0 0
        %582 = vmatprep.subr.bf16.mxu0 0
        %583 = vmatpush1.bf16.msra.mxu0 0
        %584 = vmatprep.subr.bf16.mxu0 0
        %585 = vmatpush1.bf16.msra.mxu0 0
        %586 = vmatprep.subr.bf16.mxu0 0
        %587 = vmatpush1.bf16.msra.mxu0 0
        %588 = vmatprep.subr.bf16.mxu0 0
        %589 = vmatpush1.bf16.msra.mxu0 0
        %590 = vmatprep.subr.bf16.mxu0 0
        %591 = vmatpush1.bf16.msra.mxu0 0
        %592 = vmatprep.subr.bf16.mxu0 0
        %593 = vmatpush1.bf16.msra.mxu0 0
        %594 = vmatprep.subr.bf16.mxu0 0
        %595 = vmatpush1.bf16.msra.mxu0 0
        %596 = vmatprep.subr.bf16.mxu0 0
        %597 = vmatpush1.bf16.msra.mxu0 0
        %598 = vmatprep.mubr.bf16.mxu0 0
        %599 = vmatmul.mubr.bf16.gmra.mrb[0].mxu0 %v558
        %v600 = vpop.f32.mrb[0].mxu0
        %v601 = vadd.f32 0.0, %v600
        %v602 = vpop.f32.mrb[0].mxu0
        %v603 = vadd.f32 0.0, %v602
        %v604 = vpop.f32.mrb[0].mxu0
        %v605 = vpop.f32.mrb[0].mxu0
        %606 = vdwg.mxu0
        %v607 = vadd.f32 %v551, %v601
        %v608 = vadd.f32 %v552, %v603
        %609 = vrot.lane.b32.xlu0 %v254, 127
        %v610 = vpop.permute.xlu0 %609
        %611 = vrot.lane.b32.xlu0 %v260, 127
        %v612 = vpop.permute.xlu0 %611
        %vm613 = vcmp.lt.s32.totalorder %v267, 127
        %v614 = vsel %vm613, %v610, %v612
        %v615 = vsel %vm613, %v612, %v610
        %v616 = vlaneseq
        %v617 = vshrl.u32 %v616, 7
        %v618 = vsub.s32 5, %v617
        %v619 = vrot.slane %v255, %v618
        %v620 = vlaneseq
        %v621 = vshrl.u32 %v620, 7
        %v622 = vsub.s32 5, %v621
        %v623 = vrot.slane %v256, %v622
        %v624 = vmul.f32 %v614, %v619
        %v625 = vmul.f32 %v615, %v623
        %s626 = scalar_lea.vmem %s1, 10
        %v627 = vld [vmem:[%s626] sm:$0x3]
        %v628 = vpack.c.bf16 %v624, %v624
        %v629 = vpack.c.bf16 %v625, %v625
        %v631 = vsel %vm305, %v627, 0
        %v634 = vsel %vm309, %v628, 0
        %v637 = vsel %vm309, %v629, 0
        %639 = vmatprep.subr.bf16.mxu0 %v637
        %640 = vmatpush1.bf16.msra.mxu0 %v634
        %641 = vmatprep.subr.bf16.mxu0 0
        %642 = vmatpush1.bf16.msra.mxu0 0
        %643 = vmatprep.subr.bf16.mxu0 0
        %644 = vmatpush1.bf16.msra.mxu0 0
        %645 = vmatprep.subr.bf16.mxu0 0
        %646 = vmatpush1.bf16.msra.mxu0 0
        %647 = vmatprep.subr.bf16.mxu0 0
        %648 = vmatpush1.bf16.msra.mxu0 0
        %649 = vmatprep.subr.bf16.mxu0 0
        %650 = vmatpush1.bf16.msra.mxu0 0
        %651 = vmatprep.subr.bf16.mxu0 0
        %652 = vmatpush1.bf16.msra.mxu0 0
        %653 = vmatprep.subr.bf16.mxu0 0
        %654 = vmatpush1.bf16.msra.mxu0 0
        %655 = vmatprep.subr.bf16.mxu0 0
        %656 = vmatpush1.bf16.msra.mxu0 0
        %657 = vmatprep.subr.bf16.mxu0 0
        %658 = vmatpush1.bf16.msra.mxu0 0
        %659 = vmatprep.subr.bf16.mxu0 0
        %660 = vmatpush1.bf16.msra.mxu0 0
        %661 = vmatprep.subr.bf16.mxu0 0
        %662 = vmatpush1.bf16.msra.mxu0 0
        %663 = vmatprep.subr.bf16.mxu0 0
        %664 = vmatpush1.bf16.msra.mxu0 0
        %665 = vmatprep.subr.bf16.mxu0 0
        %666 = vmatpush1.bf16.msra.mxu0 0
        %667 = vmatprep.subr.bf16.mxu0 0
        %668 = vmatpush1.bf16.msra.mxu0 0
        %669 = vmatprep.subr.bf16.mxu0 0
        %670 = vmatpush1.bf16.msra.mxu0 0
        %671 = vmatprep.mubr.bf16.mxu0 0
        %672 = vmatmul.mubr.bf16.gmra.mrb[0].mxu0 %v631
        %v673 = vpop.f32.mrb[0].mxu0
        %v674 = vadd.f32 0.0, %v673
        %v675 = vpop.f32.mrb[0].mxu0
        %v676 = vadd.f32 0.0, %v675
        %v677 = vpop.f32.mrb[0].mxu0
        %v678 = vpop.f32.mrb[0].mxu0
        %679 = vdwg.mxu0
        %v680 = vadd.f32 %v607, %v674
        %v681 = vadd.f32 %v608, %v676
        %682 = vrot.lane.b32.xlu0 %v254, 113
        %v683 = vpop.permute.xlu0 %682
        %684 = vrot.lane.b32.xlu0 %v260, 113
        %v685 = vpop.permute.xlu0 %684
        %vm686 = vcmp.lt.s32.totalorder %v267, 113
        %v687 = vsel %vm686, %v683, %v685
        %v688 = vsel %vm686, %v685, %v683
        %v689 = vlaneseq
        %v690 = vshrl.u32 %v689, 7
        %v691 = vsub.s32 6, %v690
        %v692 = vrot.slane %v255, %v691
        %v693 = vlaneseq
        %v694 = vshrl.u32 %v693, 7
        %v695 = vsub.s32 6, %v694
        %v696 = vrot.slane %v256, %v695
        %v697 = vmul.f32 %v687, %v692
        %v698 = vmul.f32 %v688, %v696
        %s699 = scalar_lea.vmem %s1, 12
        %v700 = vld [vmem:[%s699] sm:$0x3]
        %v701 = vpack.c.bf16 %v697, %v697
        %v702 = vpack.c.bf16 %v698, %v698
        %v704 = vsel %vm305, %v700, 0
        %v707 = vsel %vm309, %v701, 0
        %v710 = vsel %vm309, %v702, 0
        %712 = vmatprep.subr.bf16.mxu0 %v710
        %713 = vmatpush1.bf16.msra.mxu0 %v707
        %714 = vmatprep.subr.bf16.mxu0 0
        %715 = vmatpush1.bf16.msra.mxu0 0
        %716 = vmatprep.subr.bf16.mxu0 0
        %717 = vmatpush1.bf16.msra.mxu0 0
        %718 = vmatprep.subr.bf16.mxu0 0
        %719 = vmatpush1.bf16.msra.mxu0 0
        %720 = vmatprep.subr.bf16.mxu0 0
        %721 = vmatpush1.bf16.msra.mxu0 0
        %722 = vmatprep.subr.bf16.mxu0 0
        %723 = vmatpush1.bf16.msra.mxu0 0
        %724 = vmatprep.subr.bf16.mxu0 0
        %725 = vmatpush1.bf16.msra.mxu0 0
        %726 = vmatprep.subr.bf16.mxu0 0
        %727 = vmatpush1.bf16.msra.mxu0 0
        %728 = vmatprep.subr.bf16.mxu0 0
        %729 = vmatpush1.bf16.msra.mxu0 0
        %730 = vmatprep.subr.bf16.mxu0 0
        %731 = vmatpush1.bf16.msra.mxu0 0
        %732 = vmatprep.subr.bf16.mxu0 0
        %733 = vmatpush1.bf16.msra.mxu0 0
        %734 = vmatprep.subr.bf16.mxu0 0
        %735 = vmatpush1.bf16.msra.mxu0 0
        %736 = vmatprep.subr.bf16.mxu0 0
        %737 = vmatpush1.bf16.msra.mxu0 0
        %738 = vmatprep.subr.bf16.mxu0 0
        %739 = vmatpush1.bf16.msra.mxu0 0
        %740 = vmatprep.subr.bf16.mxu0 0
        %741 = vmatpush1.bf16.msra.mxu0 0
        %742 = vmatprep.subr.bf16.mxu0 0
        %743 = vmatpush1.bf16.msra.mxu0 0
        %744 = vmatprep.mubr.bf16.mxu0 0
        %745 = vmatmul.mubr.bf16.gmra.mrb[0].mxu0 %v704
        %v746 = vpop.f32.mrb[0].mxu0
        %v747 = vadd.f32 0.0, %v746
        %v748 = vpop.f32.mrb[0].mxu0
        %v749 = vadd.f32 0.0, %v748
        %v750 = vpop.f32.mrb[0].mxu0
        %v751 = vpop.f32.mrb[0].mxu0
        %752 = vdwg.mxu0
        %v753 = vadd.f32 %v680, %v747
        %v754 = vadd.f32 %v681, %v749
        %755 = vrot.lane.b32.xlu0 %v254, 112
        %v756 = vpop.permute.xlu0 %755
        %757 = vrot.lane.b32.xlu0 %v260, 112
        %v758 = vpop.permute.xlu0 %757
        %vm759 = vcmp.lt.s32.totalorder %v267, 112
        %v760 = vsel %vm759, %v756, %v758
        %v761 = vsel %vm759, %v758, %v756
        %v762 = vlaneseq
        %v763 = vshrl.u32 %v762, 7
        %v764 = vsub.s32 7, %v763
        %v765 = vrot.slane %v255, %v764
        %v766 = vlaneseq
        %v767 = vshrl.u32 %v766, 7
        %v768 = vsub.s32 7, %v767
        %v769 = vrot.slane %v256, %v768
        %v770 = vmul.f32 %v760, %v765
        %v771 = vmul.f32 %v761, %v769
        %s772 = scalar_lea.vmem %s1, 14
        %v773 = vld [vmem:[%s772] sm:$0x3]
        %v774 = vpack.c.bf16 %v770, %v770
        %v775 = vpack.c.bf16 %v771, %v771
        %v777 = vsel %vm305, %v773, 0
        %v780 = vsel %vm309, %v774, 0
        %v783 = vsel %vm309, %v775, 0
        %785 = vmatprep.subr.bf16.mxu0 %v783
        %786 = vmatpush1.bf16.msra.mxu0 %v780
        %787 = vmatprep.subr.bf16.mxu0 0
        %788 = vmatpush1.bf16.msra.mxu0 0
        %789 = vmatprep.subr.bf16.mxu0 0
        %790 = vmatpush1.bf16.msra.mxu0 0
        %791 = vmatprep.subr.bf16.mxu0 0
        %792 = vmatpush1.bf16.msra.mxu0 0
        %793 = vmatprep.subr.bf16.mxu0 0
        %794 = vmatpush1.bf16.msra.mxu0 0
        %795 = vmatprep.subr.bf16.mxu0 0
        %796 = vmatpush1.bf16.msra.mxu0 0
        %797 = vmatprep.subr.bf16.mxu0 0
        %798 = vmatpush1.bf16.msra.mxu0 0
        %799 = vmatprep.subr.bf16.mxu0 0
        %800 = vmatpush1.bf16.msra.mxu0 0
        %801 = vmatprep.subr.bf16.mxu0 0
        %802 = vmatpush1.bf16.msra.mxu0 0
        %803 = vmatprep.subr.bf16.mxu0 0
        %804 = vmatpush1.bf16.msra.mxu0 0
        %805 = vmatprep.subr.bf16.mxu0 0
        %806 = vmatpush1.bf16.msra.mxu0 0
        %807 = vmatprep.subr.bf16.mxu0 0
        %808 = vmatpush1.bf16.msra.mxu0 0
        %809 = vmatprep.subr.bf16.mxu0 0
        %810 = vmatpush1.bf16.msra.mxu0 0
        %811 = vmatprep.subr.bf16.mxu0 0
        %812 = vmatpush1.bf16.msra.mxu0 0
        %813 = vmatprep.subr.bf16.mxu0 0
        %814 = vmatpush1.bf16.msra.mxu0 0
        %815 = vmatprep.subr.bf16.mxu0 0
        %816 = vmatpush1.bf16.msra.mxu0 0
        %817 = vmatprep.mubr.bf16.mxu0 0
        %818 = vmatmul.mubr.bf16.gmra.mrb[0].mxu0 %v777
        %v819 = vpop.f32.mrb[0].mxu0
        %v820 = vadd.f32 0.0, %v819
        %v821 = vpop.f32.mrb[0].mxu0
        %v822 = vadd.f32 0.0, %v821
        %v823 = vpop.f32.mrb[0].mxu0
        %v824 = vpop.f32.mrb[0].mxu0
        %825 = vdwg.mxu0
        %v826 = vadd.f32 %v753, %v820
        %v827 = vadd.f32 %v754, %v822
        %828 = vrot.lane.b32.xlu0 %v254, 111
        %v829 = vpop.permute.xlu0 %828
        %830 = vrot.lane.b32.xlu0 %v260, 111
        %v831 = vpop.permute.xlu0 %830
        %vm832 = vcmp.lt.s32.totalorder %v267, 111
        %v833 = vsel %vm832, %v829, %v831
        %v834 = vsel %vm832, %v831, %v829
        %v835 = vlaneseq
        %v836 = vshrl.u32 %v835, 7
        %v837 = vsub.s32 0, %v836
        %v838 = vrot.slane %v257, %v837
        %v839 = vlaneseq
        %v840 = vshrl.u32 %v839, 7
        %v841 = vsub.s32 0, %v840
        %v842 = vrot.slane %v258, %v841
        %v843 = vmul.f32 %v833, %v838
        %v844 = vmul.f32 %v834, %v842
        %s845 = scalar_lea.vmem %s1, 16
        %v846 = vld [vmem:[%s845] sm:$0x3]
        %v847 = vpack.c.bf16 %v843, %v843
        %v848 = vpack.c.bf16 %v844, %v844
        %v850 = vsel %vm305, %v846, 0
        %v853 = vsel %vm309, %v847, 0
        %v856 = vsel %vm309, %v848, 0
        %858 = vmatprep.subr.bf16.mxu0 %v856
        %859 = vmatpush1.bf16.msra.mxu0 %v853
        %860 = vmatprep.subr.bf16.mxu0 0
        %861 = vmatpush1.bf16.msra.mxu0 0
        %862 = vmatprep.subr.bf16.mxu0 0
        %863 = vmatpush1.bf16.msra.mxu0 0
        %864 = vmatprep.subr.bf16.mxu0 0
        %865 = vmatpush1.bf16.msra.mxu0 0
        %866 = vmatprep.subr.bf16.mxu0 0
        %867 = vmatpush1.bf16.msra.mxu0 0
        %868 = vmatprep.subr.bf16.mxu0 0
        %869 = vmatpush1.bf16.msra.mxu0 0
        %870 = vmatprep.subr.bf16.mxu0 0
        %871 = vmatpush1.bf16.msra.mxu0 0
        %872 = vmatprep.subr.bf16.mxu0 0
        %873 = vmatpush1.bf16.msra.mxu0 0
        %874 = vmatprep.subr.bf16.mxu0 0
        %875 = vmatpush1.bf16.msra.mxu0 0
        %876 = vmatprep.subr.bf16.mxu0 0
        %877 = vmatpush1.bf16.msra.mxu0 0
        %878 = vmatprep.subr.bf16.mxu0 0
        %879 = vmatpush1.bf16.msra.mxu0 0
        %880 = vmatprep.subr.bf16.mxu0 0
        %881 = vmatpush1.bf16.msra.mxu0 0
        %882 = vmatprep.subr.bf16.mxu0 0
        %883 = vmatpush1.bf16.msra.mxu0 0
        %884 = vmatprep.subr.bf16.mxu0 0
        %885 = vmatpush1.bf16.msra.mxu0 0
        %886 = vmatprep.subr.bf16.mxu0 0
        %887 = vmatpush1.bf16.msra.mxu0 0
        %888 = vmatprep.subr.bf16.mxu0 0
        %889 = vmatpush1.bf16.msra.mxu0 0
        %890 = vmatprep.mubr.bf16.mxu0 0
        %891 = vmatmul.mubr.bf16.gmra.mrb[0].mxu0 %v850
        %v892 = vpop.f32.mrb[0].mxu0
        %v893 = vadd.f32 0.0, %v892
        %v894 = vpop.f32.mrb[0].mxu0
        %v895 = vadd.f32 0.0, %v894
        %v896 = vpop.f32.mrb[0].mxu0
        %v897 = vpop.f32.mrb[0].mxu0
        %898 = vdwg.mxu0
        %v899 = vadd.f32 %v826, %v893
        %v900 = vadd.f32 %v827, %v895
        %v901 = vld [vmem:[%s3] sm:$0xf]
        %903 = vset.pattern.permute.xlu0 0
        %904 = vperm.xlu0 %903, %v901
        %v905 = vpop.permute.xlu0 %904
        %v907 = vadd.f32 %v899, %v905
        %v908 = vadd.f32 %v900, %v905
        %v909 = vmax.f32 %v907, 0.0
        %v910 = vmax.f32 %v908, 0.0
        %911 = vrot.lane.b32.xlu0 %v909, 17
        %v912 = vpop.permute.xlu0 %911
        %913 = vrot.lane.b32.xlu0 %v910, 17
        %v914 = vpop.permute.xlu0 %913
        %v915 = vsel %vm268, %v912, %v914
        %v916 = vsel %vm268, %v914, %v912
        %v917 = vmul.f32 %v916, %v274
        %v918 = vmul.f32 %v915, %v278
        %v919 = vld [vmem:[%s2] sm:$0x3]
        %v920 = vpack.c.bf16 %v917, %v917
        %v921 = vpack.c.bf16 %v918, %v918
        %922 = vrot.lane.b32.xlu0 %v909, 16
        %v923 = vpop.permute.xlu0 %922
        %924 = vrot.lane.b32.xlu0 %v910, 16
        %v925 = vpop.permute.xlu0 %924
        %v926 = vsel %vm288, %v923, %v925
        %v927 = vsel %vm288, %v925, %v923
        %v928 = vmul.f32 %v927, %v294
        %v929 = vmul.f32 %v926, %v298
        %s930 = scalar_lea.vmem %s2, 2
        %v931 = vld [vmem:[%s930] sm:$0x3]
        %v932 = vpack.c.bf16 %v928, %v928
        %v933 = vpack.c.bf16 %v929, %v929
        %v935 = vsel %vm305, %v931, 0
        %v938 = vsel %vm309, %v932, 0
        %v941 = vsel %vm309, %v933, 0
        %943 = vmatprep.subr.bf16.mxu0 %v941
        %944 = vmatpush1.bf16.msra.mxu0 %v938
        %945 = vmatprep.subr.bf16.mxu0 0
        %946 = vmatpush1.bf16.msra.mxu0 0
        %947 = vmatprep.subr.bf16.mxu0 0
        %948 = vmatpush1.bf16.msra.mxu0 0
        %949 = vmatprep.subr.bf16.mxu0 0
        %950 = vmatpush1.bf16.msra.mxu0 0
        %951 = vmatprep.subr.bf16.mxu0 0
        %952 = vmatpush1.bf16.msra.mxu0 0
        %953 = vmatprep.subr.bf16.mxu0 0
        %954 = vmatpush1.bf16.msra.mxu0 0
        %955 = vmatprep.subr.bf16.mxu0 0
        %956 = vmatpush1.bf16.msra.mxu0 0
        %957 = vmatprep.subr.bf16.mxu0 0
        %958 = vmatpush1.bf16.msra.mxu0 0
        %959 = vmatprep.subr.bf16.mxu0 0
        %960 = vmatpush1.bf16.msra.mxu0 0
        %961 = vmatprep.subr.bf16.mxu0 0
        %962 = vmatpush1.bf16.msra.mxu0 0
        %963 = vmatprep.subr.bf16.mxu0 0
        %964 = vmatpush1.bf16.msra.mxu0 0
        %965 = vmatprep.subr.bf16.mxu0 0
        %966 = vmatpush1.bf16.msra.mxu0 0
        %967 = vmatprep.subr.bf16.mxu0 0
        %968 = vmatpush1.bf16.msra.mxu0 0
        %969 = vmatprep.subr.bf16.mxu0 0
        %970 = vmatpush1.bf16.msra.mxu0 0
        %971 = vmatprep.subr.bf16.mxu0 0
        %972 = vmatpush1.bf16.msra.mxu0 0
        %973 = vmatprep.subr.bf16.mxu0 0
        %974 = vmatpush1.bf16.msra.mxu0 0
        %975 = vmatprep.mubr.bf16.mxu0 0
        %976 = vmatmul.mubr.bf16.gmra.mrb[0].mxu0 %v935
        %v977 = vpop.f32.mrb[0].mxu0
        %v978 = vadd.f32 0.0, %v977
        %v979 = vpop.f32.mrb[0].mxu0
        %v980 = vadd.f32 0.0, %v979
        %v981 = vpop.f32.mrb[0].mxu0
        %v982 = vpop.f32.mrb[0].mxu0
        %983 = vdwg.mxu0
        %v985 = vsel %vm305, %v919, 0
        %v988 = vsel %vm309, %v920, 0
        %v991 = vsel %vm309, %v921, 0
        %993 = vmatprep.subr.bf16.mxu0 %v991
        %994 = vmatpush1.bf16.msra.mxu0 %v988
        %995 = vmatprep.subr.bf16.mxu0 0
        %996 = vmatpush1.bf16.msra.mxu0 0
        %997 = vmatprep.subr.bf16.mxu0 0
        %998 = vmatpush1.bf16.msra.mxu0 0
        %999 = vmatprep.subr.bf16.mxu0 0
        %1000 = vmatpush1.bf16.msra.mxu0 0
        %1001 = vmatprep.subr.bf16.mxu0 0
        %1002 = vmatpush1.bf16.msra.mxu0 0
        %1003 = vmatprep.subr.bf16.mxu0 0
        %1004 = vmatpush1.bf16.msra.mxu0 0
        %1005 = vmatprep.subr.bf16.mxu0 0
        %1006 = vmatpush1.bf16.msra.mxu0 0
        %1007 = vmatprep.subr.bf16.mxu0 0
        %1008 = vmatpush1.bf16.msra.mxu0 0
        %1009 = vmatprep.subr.bf16.mxu0 0
        %1010 = vmatpush1.bf16.msra.mxu0 0
        %1011 = vmatprep.subr.bf16.mxu0 0
        %1012 = vmatpush1.bf16.msra.mxu0 0
        %1013 = vmatprep.subr.bf16.mxu0 0
        %1014 = vmatpush1.bf16.msra.mxu0 0
        %1015 = vmatprep.subr.bf16.mxu0 0
        %1016 = vmatpush1.bf16.msra.mxu0 0
        %1017 = vmatprep.subr.bf16.mxu0 0
        %1018 = vmatpush1.bf16.msra.mxu0 0
        %1019 = vmatprep.subr.bf16.mxu0 0
        %1020 = vmatpush1.bf16.msra.mxu0 0
        %1021 = vmatprep.subr.bf16.mxu0 0
        %1022 = vmatpush1.bf16.msra.mxu0 0
        %1023 = vmatprep.subr.bf16.mxu0 0
        %1024 = vmatpush1.bf16.msra.mxu0 0
        %1025 = vmatprep.mubr.bf16.mxu0 0
        %1026 = vmatmul.mubr.bf16.gmra.mrb[0].mxu0 %v985
        %v1027 = vpop.f32.mrb[0].mxu0
        %v1028 = vadd.f32 %v978, %v1027
        %v1029 = vpop.f32.mrb[0].mxu0
        %v1030 = vadd.f32 %v980, %v1029
        %v1031 = vpop.f32.mrb[0].mxu0
        %v1032 = vpop.f32.mrb[0].mxu0
        %1033 = vdwg.mxu0
        %1034 = vrot.lane.b32.xlu0 %v909, 15
        %v1035 = vpop.permute.xlu0 %1034
        %1036 = vrot.lane.b32.xlu0 %v910, 15
        %v1037 = vpop.permute.xlu0 %1036
        %v1038 = vsel %vm411, %v1035, %v1037
        %v1039 = vsel %vm411, %v1037, %v1035
        %v1040 = vmul.f32 %v1039, %v417
        %v1041 = vmul.f32 %v1038, %v421
        %s1042 = scalar_lea.vmem %s2, 4
        %v1043 = vld [vmem:[%s1042] sm:$0x3]
        %v1044 = vpack.c.bf16 %v1040, %v1040
        %v1045 = vpack.c.bf16 %v1041, %v1041
        %v1047 = vsel %vm305, %v1043, 0
        %v1050 = vsel %vm309, %v1044, 0
        %v1053 = vsel %vm309, %v1045, 0
        %1055 = vmatprep.subr.bf16.mxu0 %v1053
        %1056 = vmatpush1.bf16.msra.mxu0 %v1050
        %1057 = vmatprep.subr.bf16.mxu0 0
        %1058 = vmatpush1.bf16.msra.mxu0 0
        %1059 = vmatprep.subr.bf16.mxu0 0
        %1060 = vmatpush1.bf16.msra.mxu0 0
        %1061 = vmatprep.subr.bf16.mxu0 0
        %1062 = vmatpush1.bf16.msra.mxu0 0
        %1063 = vmatprep.subr.bf16.mxu0 0
        %1064 = vmatpush1.bf16.msra.mxu0 0
        %1065 = vmatprep.subr.bf16.mxu0 0
        %1066 = vmatpush1.bf16.msra.mxu0 0
        %1067 = vmatprep.subr.bf16.mxu0 0
        %1068 = vmatpush1.bf16.msra.mxu0 0
        %1069 = vmatprep.subr.bf16.mxu0 0
        %1070 = vmatpush1.bf16.msra.mxu0 0
        %1071 = vmatprep.subr.bf16.mxu0 0
        %1072 = vmatpush1.bf16.msra.mxu0 0
        %1073 = vmatprep.subr.bf16.mxu0 0
        %1074 = vmatpush1.bf16.msra.mxu0 0
        %1075 = vmatprep.subr.bf16.mxu0 0
        %1076 = vmatpush1.bf16.msra.mxu0 0
        %1077 = vmatprep.subr.bf16.mxu0 0
        %1078 = vmatpush1.bf16.msra.mxu0 0
        %1079 = vmatprep.subr.bf16.mxu0 0
        %1080 = vmatpush1.bf16.msra.mxu0 0
        %1081 = vmatprep.subr.bf16.mxu0 0
        %1082 = vmatpush1.bf16.msra.mxu0 0
        %1083 = vmatprep.subr.bf16.mxu0 0
        %1084 = vmatpush1.bf16.msra.mxu0 0
        %1085 = vmatprep.subr.bf16.mxu0 0
        %1086 = vmatpush1.bf16.msra.mxu0 0
        %1087 = vmatprep.mubr.bf16.mxu0 0
        %1088 = vmatmul.mubr.bf16.gmra.mrb[0].mxu0 %v1047
        %v1089 = vpop.f32.mrb[0].mxu0
        %v1090 = vadd.f32 0.0, %v1089
        %v1091 = vpop.f32.mrb[0].mxu0
        %v1092 = vadd.f32 0.0, %v1091
        %v1093 = vpop.f32.mrb[0].mxu0
        %v1094 = vpop.f32.mrb[0].mxu0
        %1095 = vdwg.mxu0
        %v1096 = vadd.f32 %v1028, %v1090
        %v1097 = vadd.f32 %v1030, %v1092
        %1098 = vrot.lane.b32.xlu0 %v909, 1
        %v1099 = vpop.permute.xlu0 %1098
        %1100 = vrot.lane.b32.xlu0 %v910, 1
        %v1101 = vpop.permute.xlu0 %1100
        %v1102 = vsel %vm484, %v1099, %v1101
        %v1103 = vsel %vm484, %v1101, %v1099
        %v1104 = vmul.f32 %v1103, %v490
        %v1105 = vmul.f32 %v1102, %v494
        %s1106 = scalar_lea.vmem %s2, 6
        %v1107 = vld [vmem:[%s1106] sm:$0x3]
        %v1108 = vpack.c.bf16 %v1104, %v1104
        %v1109 = vpack.c.bf16 %v1105, %v1105
        %v1111 = vsel %vm305, %v1107, 0
        %v1114 = vsel %vm309, %v1108, 0
        %v1117 = vsel %vm309, %v1109, 0
        %1119 = vmatprep.subr.bf16.mxu0 %v1117
        %1120 = vmatpush1.bf16.msra.mxu0 %v1114
        %1121 = vmatprep.subr.bf16.mxu0 0
        %1122 = vmatpush1.bf16.msra.mxu0 0
        %1123 = vmatprep.subr.bf16.mxu0 0
        %1124 = vmatpush1.bf16.msra.mxu0 0
        %1125 = vmatprep.subr.bf16.mxu0 0
        %1126 = vmatpush1.bf16.msra.mxu0 0
        %1127 = vmatprep.subr.bf16.mxu0 0
        %1128 = vmatpush1.bf16.msra.mxu0 0
        %1129 = vmatprep.subr.bf16.mxu0 0
        %1130 = vmatpush1.bf16.msra.mxu0 0
        %1131 = vmatprep.subr.bf16.mxu0 0
        %1132 = vmatpush1.bf16.msra.mxu0 0
        %1133 = vmatprep.subr.bf16.mxu0 0
        %1134 = vmatpush1.bf16.msra.mxu0 0
        %1135 = vmatprep.subr.bf16.mxu0 0
        %1136 = vmatpush1.bf16.msra.mxu0 0
        %1137 = vmatprep.subr.bf16.mxu0 0
        %1138 = vmatpush1.bf16.msra.mxu0 0
        %1139 = vmatprep.subr.bf16.mxu0 0
        %1140 = vmatpush1.bf16.msra.mxu0 0
        %1141 = vmatprep.subr.bf16.mxu0 0
        %1142 = vmatpush1.bf16.msra.mxu0 0
        %1143 = vmatprep.subr.bf16.mxu0 0
        %1144 = vmatpush1.bf16.msra.mxu0 0
        %1145 = vmatprep.subr.bf16.mxu0 0
        %1146 = vmatpush1.bf16.msra.mxu0 0
        %1147 = vmatprep.subr.bf16.mxu0 0
        %1148 = vmatpush1.bf16.msra.mxu0 0
        %1149 = vmatprep.subr.bf16.mxu0 0
        %1150 = vmatpush1.bf16.msra.mxu0 0
        %1151 = vmatprep.mubr.bf16.mxu0 0
        %1152 = vmatmul.mubr.bf16.gmra.mrb[0].mxu0 %v1111
        %v1153 = vpop.f32.mrb[0].mxu0
        %v1154 = vadd.f32 0.0, %v1153
        %v1155 = vpop.f32.mrb[0].mxu0
        %v1156 = vadd.f32 0.0, %v1155
        %v1157 = vpop.f32.mrb[0].mxu0
        %v1158 = vpop.f32.mrb[0].mxu0
        %1159 = vdwg.mxu0
        %v1160 = vadd.f32 %v1096, %v1154
        %v1161 = vadd.f32 %v1097, %v1156
        %s1162 = scalar_lea.vmem %s2, 8
        %v1163 = vld [vmem:[%s1162] sm:$0x3]
        %v1164 = vpack.c.bf16 %v909, %v909
        %v1165 = vpack.c.bf16 %v910, %v910
        %v1167 = vsel %vm305, %v1163, 0
        %v1170 = vsel %vm309, %v1164, 0
        %v1173 = vsel %vm309, %v1165, 0
        %1175 = vmatprep.subr.bf16.mxu0 %v1173
        %1176 = vmatpush1.bf16.msra.mxu0 %v1170
        %1177 = vmatprep.subr.bf16.mxu0 0
        %1178 = vmatpush1.bf16.msra.mxu0 0
        %1179 = vmatprep.subr.bf16.mxu0 0
        %1180 = vmatpush1.bf16.msra.mxu0 0
        %1181 = vmatprep.subr.bf16.mxu0 0
        %1182 = vmatpush1.bf16.msra.mxu0 0
        %1183 = vmatprep.subr.bf16.mxu0 0
        %1184 = vmatpush1.bf16.msra.mxu0 0
        %1185 = vmatprep.subr.bf16.mxu0 0
        %1186 = vmatpush1.bf16.msra.mxu0 0
        %1187 = vmatprep.subr.bf16.mxu0 0
        %1188 = vmatpush1.bf16.msra.mxu0 0
        %1189 = vmatprep.subr.bf16.mxu0 0
        %1190 = vmatpush1.bf16.msra.mxu0 0
        %1191 = vmatprep.subr.bf16.mxu0 0
        %1192 = vmatpush1.bf16.msra.mxu0 0
        %1193 = vmatprep.subr.bf16.mxu0 0
        %1194 = vmatpush1.bf16.msra.mxu0 0
        %1195 = vmatprep.subr.bf16.mxu0 0
        %1196 = vmatpush1.bf16.msra.mxu0 0
        %1197 = vmatprep.subr.bf16.mxu0 0
        %1198 = vmatpush1.bf16.msra.mxu0 0
        %1199 = vmatprep.subr.bf16.mxu0 0
        %1200 = vmatpush1.bf16.msra.mxu0 0
        %1201 = vmatprep.subr.bf16.mxu0 0
        %1202 = vmatpush1.bf16.msra.mxu0 0
        %1203 = vmatprep.subr.bf16.mxu0 0
        %1204 = vmatpush1.bf16.msra.mxu0 0
        %1205 = vmatprep.subr.bf16.mxu0 0
        %1206 = vmatpush1.bf16.msra.mxu0 0
        %1207 = vmatprep.mubr.bf16.mxu0 0
        %1208 = vmatmul.mubr.bf16.gmra.mrb[0].mxu0 %v1167
        %v1209 = vpop.f32.mrb[0].mxu0
        %v1210 = vadd.f32 0.0, %v1209
        %v1211 = vpop.f32.mrb[0].mxu0
        %v1212 = vadd.f32 0.0, %v1211
        %v1213 = vpop.f32.mrb[0].mxu0
        %v1214 = vpop.f32.mrb[0].mxu0
        %1215 = vdwg.mxu0
        %v1216 = vadd.f32 %v1160, %v1210
        %v1217 = vadd.f32 %v1161, %v1212
        %1218 = vrot.lane.b32.xlu0 %v909, 127
        %v1219 = vpop.permute.xlu0 %1218
        %1220 = vrot.lane.b32.xlu0 %v910, 127
        %v1221 = vpop.permute.xlu0 %1220
        %v1222 = vsel %vm613, %v1219, %v1221
        %v1223 = vsel %vm613, %v1221, %v1219
        %v1224 = vmul.f32 %v1222, %v619
        %v1225 = vmul.f32 %v1223, %v623
        %s1226 = scalar_lea.vmem %s2, 10
        %v1227 = vld [vmem:[%s1226] sm:$0x3]
        %v1228 = vpack.c.bf16 %v1224, %v1224
        %v1229 = vpack.c.bf16 %v1225, %v1225
        %v1231 = vsel %vm305, %v1227, 0
        %v1234 = vsel %vm309, %v1228, 0
        %v1237 = vsel %vm309, %v1229, 0
        %1239 = vmatprep.subr.bf16.mxu0 %v1237
        %1240 = vmatpush1.bf16.msra.mxu0 %v1234
        %1241 = vmatprep.subr.bf16.mxu0 0
        %1242 = vmatpush1.bf16.msra.mxu0 0
        %1243 = vmatprep.subr.bf16.mxu0 0
        %1244 = vmatpush1.bf16.msra.mxu0 0
        %1245 = vmatprep.subr.bf16.mxu0 0
        %1246 = vmatpush1.bf16.msra.mxu0 0
        %1247 = vmatprep.subr.bf16.mxu0 0
        %1248 = vmatpush1.bf16.msra.mxu0 0
        %1249 = vmatprep.subr.bf16.mxu0 0
        %1250 = vmatpush1.bf16.msra.mxu0 0
        %1251 = vmatprep.subr.bf16.mxu0 0
        %1252 = vmatpush1.bf16.msra.mxu0 0
        %1253 = vmatprep.subr.bf16.mxu0 0
        %1254 = vmatpush1.bf16.msra.mxu0 0
        %1255 = vmatprep.subr.bf16.mxu0 0
        %1256 = vmatpush1.bf16.msra.mxu0 0
        %1257 = vmatprep.subr.bf16.mxu0 0
        %1258 = vmatpush1.bf16.msra.mxu0 0
        %1259 = vmatprep.subr.bf16.mxu0 0
        %1260 = vmatpush1.bf16.msra.mxu0 0
        %1261 = vmatprep.subr.bf16.mxu0 0
        %1262 = vmatpush1.bf16.msra.mxu0 0
        %1263 = vmatprep.subr.bf16.mxu0 0
        %1264 = vmatpush1.bf16.msra.mxu0 0
        %1265 = vmatprep.subr.bf16.mxu0 0
        %1266 = vmatpush1.bf16.msra.mxu0 0
        %1267 = vmatprep.subr.bf16.mxu0 0
        %1268 = vmatpush1.bf16.msra.mxu0 0
        %1269 = vmatprep.subr.bf16.mxu0 0
        %1270 = vmatpush1.bf16.msra.mxu0 0
        %1271 = vmatprep.mubr.bf16.mxu0 0
        %1272 = vmatmul.mubr.bf16.gmra.mrb[0].mxu0 %v1231
        %v1273 = vpop.f32.mrb[0].mxu0
        %v1274 = vadd.f32 0.0, %v1273
        %v1275 = vpop.f32.mrb[0].mxu0
        %v1276 = vadd.f32 0.0, %v1275
        %v1277 = vpop.f32.mrb[0].mxu0
        %v1278 = vpop.f32.mrb[0].mxu0
        %1279 = vdwg.mxu0
        %v1280 = vadd.f32 %v1216, %v1274
        %v1281 = vadd.f32 %v1217, %v1276
        %1282 = vrot.lane.b32.xlu0 %v909, 113
        %v1283 = vpop.permute.xlu0 %1282
        %1284 = vrot.lane.b32.xlu0 %v910, 113
        %v1285 = vpop.permute.xlu0 %1284
        %v1286 = vsel %vm686, %v1283, %v1285
        %v1287 = vsel %vm686, %v1285, %v1283
        %v1288 = vmul.f32 %v1286, %v692
        %v1289 = vmul.f32 %v1287, %v696
        %s1290 = scalar_lea.vmem %s2, 12
        %v1291 = vld [vmem:[%s1290] sm:$0x3]
        %v1292 = vpack.c.bf16 %v1288, %v1288
        %v1293 = vpack.c.bf16 %v1289, %v1289
        %v1295 = vsel %vm305, %v1291, 0
        %v1298 = vsel %vm309, %v1292, 0
        %v1301 = vsel %vm309, %v1293, 0
        %1303 = vmatprep.subr.bf16.mxu0 %v1301
        %1304 = vmatpush1.bf16.msra.mxu0 %v1298
        %1305 = vmatprep.subr.bf16.mxu0 0
        %1306 = vmatpush1.bf16.msra.mxu0 0
        %1307 = vmatprep.subr.bf16.mxu0 0
        %1308 = vmatpush1.bf16.msra.mxu0 0
        %1309 = vmatprep.subr.bf16.mxu0 0
        %1310 = vmatpush1.bf16.msra.mxu0 0
        %1311 = vmatprep.subr.bf16.mxu0 0
        %1312 = vmatpush1.bf16.msra.mxu0 0
        %1313 = vmatprep.subr.bf16.mxu0 0
        %1314 = vmatpush1.bf16.msra.mxu0 0
        %1315 = vmatprep.subr.bf16.mxu0 0
        %1316 = vmatpush1.bf16.msra.mxu0 0
        %1317 = vmatprep.subr.bf16.mxu0 0
        %1318 = vmatpush1.bf16.msra.mxu0 0
        %1319 = vmatprep.subr.bf16.mxu0 0
        %1320 = vmatpush1.bf16.msra.mxu0 0
        %1321 = vmatprep.subr.bf16.mxu0 0
        %1322 = vmatpush1.bf16.msra.mxu0 0
        %1323 = vmatprep.subr.bf16.mxu0 0
        %1324 = vmatpush1.bf16.msra.mxu0 0
        %1325 = vmatprep.subr.bf16.mxu0 0
        %1326 = vmatpush1.bf16.msra.mxu0 0
        %1327 = vmatprep.subr.bf16.mxu0 0
        %1328 = vmatpush1.bf16.msra.mxu0 0
        %1329 = vmatprep.subr.bf16.mxu0 0
        %1330 = vmatpush1.bf16.msra.mxu0 0
        %1331 = vmatprep.subr.bf16.mxu0 0
        %1332 = vmatpush1.bf16.msra.mxu0 0
        %1333 = vmatprep.subr.bf16.mxu0 0
        %1334 = vmatpush1.bf16.msra.mxu0 0
        %1335 = vmatprep.mubr.bf16.mxu0 0
        %1336 = vmatmul.mubr.bf16.gmra.mrb[0].mxu0 %v1295
        %v1337 = vpop.f32.mrb[0].mxu0
        %v1338 = vadd.f32 0.0, %v1337
        %v1339 = vpop.f32.mrb[0].mxu0
        %v1340 = vadd.f32 0.0, %v1339
        %v1341 = vpop.f32.mrb[0].mxu0
        %v1342 = vpop.f32.mrb[0].mxu0
        %1343 = vdwg.mxu0
        %v1344 = vadd.f32 %v1280, %v1338
        %v1345 = vadd.f32 %v1281, %v1340
        %1346 = vrot.lane.b32.xlu0 %v909, 112
        %v1347 = vpop.permute.xlu0 %1346
        %1348 = vrot.lane.b32.xlu0 %v910, 112
        %v1349 = vpop.permute.xlu0 %1348
        %v1350 = vsel %vm759, %v1347, %v1349
        %v1351 = vsel %vm759, %v1349, %v1347
        %v1352 = vmul.f32 %v1350, %v765
        %v1353 = vmul.f32 %v1351, %v769
        %s1354 = scalar_lea.vmem %s2, 14
        %v1355 = vld [vmem:[%s1354] sm:$0x3]
        %v1356 = vpack.c.bf16 %v1352, %v1352
        %v1357 = vpack.c.bf16 %v1353, %v1353
        %v1359 = vsel %vm305, %v1355, 0
        %v1362 = vsel %vm309, %v1356, 0
        %v1365 = vsel %vm309, %v1357, 0
        %1367 = vmatprep.subr.bf16.mxu0 %v1365
        %1368 = vmatpush1.bf16.msra.mxu0 %v1362
        %1369 = vmatprep.subr.bf16.mxu0 0
        %1370 = vmatpush1.bf16.msra.mxu0 0
        %1371 = vmatprep.subr.bf16.mxu0 0
        %1372 = vmatpush1.bf16.msra.mxu0 0
        %1373 = vmatprep.subr.bf16.mxu0 0
        %1374 = vmatpush1.bf16.msra.mxu0 0
        %1375 = vmatprep.subr.bf16.mxu0 0
        %1376 = vmatpush1.bf16.msra.mxu0 0
        %1377 = vmatprep.subr.bf16.mxu0 0
        %1378 = vmatpush1.bf16.msra.mxu0 0
        %1379 = vmatprep.subr.bf16.mxu0 0
        %1380 = vmatpush1.bf16.msra.mxu0 0
        %1381 = vmatprep.subr.bf16.mxu0 0
        %1382 = vmatpush1.bf16.msra.mxu0 0
        %1383 = vmatprep.subr.bf16.mxu0 0
        %1384 = vmatpush1.bf16.msra.mxu0 0
        %1385 = vmatprep.subr.bf16.mxu0 0
        %1386 = vmatpush1.bf16.msra.mxu0 0
        %1387 = vmatprep.subr.bf16.mxu0 0
        %1388 = vmatpush1.bf16.msra.mxu0 0
        %1389 = vmatprep.subr.bf16.mxu0 0
        %1390 = vmatpush1.bf16.msra.mxu0 0
        %1391 = vmatprep.subr.bf16.mxu0 0
        %1392 = vmatpush1.bf16.msra.mxu0 0
        %1393 = vmatprep.subr.bf16.mxu0 0
        %1394 = vmatpush1.bf16.msra.mxu0 0
        %1395 = vmatprep.subr.bf16.mxu0 0
        %1396 = vmatpush1.bf16.msra.mxu0 0
        %1397 = vmatprep.subr.bf16.mxu0 0
        %1398 = vmatpush1.bf16.msra.mxu0 0
        %1399 = vmatprep.mubr.bf16.mxu0 0
        %1400 = vmatmul.mubr.bf16.gmra.mrb[0].mxu0 %v1359
        %v1401 = vpop.f32.mrb[0].mxu0
        %v1402 = vadd.f32 0.0, %v1401
        %v1403 = vpop.f32.mrb[0].mxu0
        %v1404 = vadd.f32 0.0, %v1403
        %v1405 = vpop.f32.mrb[0].mxu0
        %v1406 = vpop.f32.mrb[0].mxu0
        %1407 = vdwg.mxu0
        %v1408 = vadd.f32 %v1344, %v1402
        %v1409 = vadd.f32 %v1345, %v1404
        %1410 = vrot.lane.b32.xlu0 %v909, 111
        %v1411 = vpop.permute.xlu0 %1410
        %1412 = vrot.lane.b32.xlu0 %v910, 111
        %v1413 = vpop.permute.xlu0 %1412
        %v1414 = vsel %vm832, %v1411, %v1413
        %v1415 = vsel %vm832, %v1413, %v1411
        %v1416 = vmul.f32 %v1414, %v838
        %v1417 = vmul.f32 %v1415, %v842
        %s1418 = scalar_lea.vmem %s2, 16
        %v1419 = vld [vmem:[%s1418] sm:$0x3]
        %v1420 = vpack.c.bf16 %v1416, %v1416
        %v1421 = vpack.c.bf16 %v1417, %v1417
        %v1423 = vsel %vm305, %v1419, 0
        %v1426 = vsel %vm309, %v1420, 0
        %v1429 = vsel %vm309, %v1421, 0
        %1431 = vmatprep.subr.bf16.mxu0 %v1429
        %1432 = vmatpush1.bf16.msra.mxu0 %v1426
        %1433 = vmatprep.subr.bf16.mxu0 0
        %1434 = vmatpush1.bf16.msra.mxu0 0
        %1435 = vmatprep.subr.bf16.mxu0 0
        %1436 = vmatpush1.bf16.msra.mxu0 0
        %1437 = vmatprep.subr.bf16.mxu0 0
        %1438 = vmatpush1.bf16.msra.mxu0 0
        %1439 = vmatprep.subr.bf16.mxu0 0
        %1440 = vmatpush1.bf16.msra.mxu0 0
        %1441 = vmatprep.subr.bf16.mxu0 0
        %1442 = vmatpush1.bf16.msra.mxu0 0
        %1443 = vmatprep.subr.bf16.mxu0 0
        %1444 = vmatpush1.bf16.msra.mxu0 0
        %1445 = vmatprep.subr.bf16.mxu0 0
        %1446 = vmatpush1.bf16.msra.mxu0 0
        %1447 = vmatprep.subr.bf16.mxu0 0
        %1448 = vmatpush1.bf16.msra.mxu0 0
        %1449 = vmatprep.subr.bf16.mxu0 0
        %1450 = vmatpush1.bf16.msra.mxu0 0
        %1451 = vmatprep.subr.bf16.mxu0 0
        %1452 = vmatpush1.bf16.msra.mxu0 0
        %1453 = vmatprep.subr.bf16.mxu0 0
        %1454 = vmatpush1.bf16.msra.mxu0 0
        %1455 = vmatprep.subr.bf16.mxu0 0
        %1456 = vmatpush1.bf16.msra.mxu0 0
        %1457 = vmatprep.subr.bf16.mxu0 0
        %1458 = vmatpush1.bf16.msra.mxu0 0
        %1459 = vmatprep.subr.bf16.mxu0 0
        %1460 = vmatpush1.bf16.msra.mxu0 0
        %1461 = vmatprep.subr.bf16.mxu0 0
        %1462 = vmatpush1.bf16.msra.mxu0 0
        %1463 = vmatprep.mubr.bf16.mxu0 0
        %1464 = vmatmul.mubr.bf16.gmra.mrb[0].mxu0 %v1423
        %v1465 = vpop.f32.mrb[0].mxu0
        %v1466 = vadd.f32 0.0, %v1465
        %v1467 = vpop.f32.mrb[0].mxu0
        %v1468 = vadd.f32 0.0, %v1467
        %v1469 = vpop.f32.mrb[0].mxu0
        %v1470 = vpop.f32.mrb[0].mxu0
        %1471 = vdwg.mxu0
        %v1472 = vadd.f32 %v1408, %v1466
        %v1473 = vadd.f32 %v1409, %v1468
        %v1474 = vld [vmem:[%s4] sm:$0xf]
        %1476 = vset.pattern.permute.xlu0 0
        %1477 = vperm.xlu0 %1476, %v1474
        %v1478 = vpop.permute.xlu0 %1477
        %v1480 = vadd.f32 %v1472, %v1478
        %v1481 = vadd.f32 %v1473, %v1478
        %v1482 = vadd.f32 %v1480, %v254
        %v1483 = vadd.f32 %v1481, %v260
        %v1484 = vmax.f32 %v1482, 0.0
        %v1485 = vmax.f32 %v1483, 0.0
        %v1488 = vcombine.low %v1484, %v1485
        %1490 = vst [vmem:[%s245] sm:$0xff] %v1488
        %s1491 = sand.u32 %s159, 1
        %s1492 = scalar_lea.sflag [#allocation3], %s1491
        %s1493 = sand.u32 %s159, 1
        %s1494 = smul.addr %s1493, 8
        %s1495 = scalar_lea.vmem [#allocation2], %s1494
        // Predicated region
        $region45: #{tpu_custom_call.1} parent=43 // pred_check
          %p1496 = pneg %p169
        $region46: #{tpu_custom_call.1} parent=43 // pred_check_branch
          %1498 = sbr.rel (%p1496) target = $region48
        $region47: #{tpu_custom_call.1} parent=43 // pred_region
          %s1499 = smul.u32 2, %s20
          %s1501 = ssub.s32 128, 128
          %1502 = vsyncadd %s1492, %s1501
          %s1503 = smul.addr %s1499, 64
          %s1504 = scalar_lea.hbm %s6, %s1503
          %s1506 = sshll.u32 %s1495, 4
          %s1507 = int_to_ptr.vmem [resolvable:$true] %s1506
          %1509 = dma.vmem_to_hbm [thread:$0]  %s1507, 128, %s1504, %s1492
        $region48: #{tpu_custom_call.1} parent=43 // pred_fallthru
          _
      $region44: #{tpu_custom_call.1} parent=5 // pred_fallthru
        _
      %p1510 = scmp.le.s32.totalorder 2, %s15
      // Predicated region
      $region49: #{tpu_custom_call.1} parent=5 // pred_check
        %p1511 = pneg %p1510
      $region50: #{tpu_custom_call.1} parent=5 // pred_check_branch
        %1513 = sbr.rel (%p1511) target = $region52
      $region51: #{tpu_custom_call.1} parent=5 // pred_region
        %s1514 = ssub.s32 %s15, 2
        // Predicated region
        $region53: #{tpu_custom_call.1} parent=51 // pred_check
          %p1515 = pneg %p175
        $region54: #{tpu_custom_call.1} parent=51 // pred_check_branch
          %1517 = sbr.rel (%p1515) target = $region56
        $region55: #{tpu_custom_call.1} parent=51 // pred_region
          %s1518 = sand.u32 %s160, 1
          %s1519 = scalar_lea.sflag [#allocation3], %s1518
          %s1520 = sand.u32 %s160, 1
          %s1521 = smul.addr %s1520, 8
          %s1522 = scalar_lea.vmem [#allocation2], %s1521
          %1523 = dma.done %s1519, 128
        $region56: #{tpu_custom_call.1} parent=51 // pred_fallthru
          _
      $region52: #{tpu_custom_call.1} parent=5 // pred_fallthru
        _
    $region6: #{tpu_custom_call.1} parent=1 // loop_footer
      %s19 = sadd.s32 1, %s15
    $region7: #{tpu_custom_call.1} parent=1 // loop_footer_branch
      %14 = sbr.rel target = $region3
    $region8: #{tpu_custom_call.1} parent=1 // loop_exit
      _
    %1524 = vsyncpa [#allocation3], 1
    %s1525 = scalar_lea.sflag [#allocation3], 1
    %1526 = vsyncpa %s1525, 1

</llo_original>
